<compile_context>
chip_gen: v5e
topology: v5e:2x2
jax: 0.10.0
libtpu: 0.0.40
codegen_flags: <defaults>
</compile_context>

<pallas_src>
import functools

import jax
import jax.numpy as jnp
from jax.experimental import pallas as pl
from jax.experimental.pallas import tpu as pltpu

_BN_EPS = 1e-5
_HIDDEN = 512
# Leave ~30%+ headroom under v7x's 64 MiB physical VMEM; also raises v5e's
# small default scoped limit.  Sized for the default 1024-row batch tile.
_VMEM_LIMIT_BYTES = 40 * 1024 * 1024


def _round_up(x, m):
    return ((x + m - 1) // m) * m


def _elu(x):
    # ELU(alpha=1): exp evaluated once (EUP slot), select stays on the VPU.
    e = jnp.exp(jnp.minimum(x, 0.0))
    return jnp.where(x > 0, x, e - 1.0)


def _row_mask(shape, tile_b, total_b):
    rows = jax.lax.broadcasted_iota(jnp.int32, shape, 0) + pl.program_id(0) * tile_b
    return rows < total_b


def _partial_stats(h, mask):
    # Per-tile partial BN statistics; padded rows of a ragged last tile are
    # excluded so the global mean/var (computed in the wrapper with 1/global_B)
    # are exact.
    hm = jnp.where(mask, h, 0.0)
    s = jnp.sum(hm, axis=0, keepdims=True)        # (1, H)
    sq = jnp.sum(hm * hm, axis=0, keepdims=True)  # (1, H)
    return jnp.concatenate([s, sq], axis=0)       # (2, H)


# ---------------- kernels ----------------

def linear_stats_kernel(total_b, tile_b, x_ref, w_ref, h_ref, stats_ref):
    # Linear1 (bias cancels under training-mode BN) + BN1 partial stats.
    x = x_ref[...].astype(jnp.bfloat16)
    h = jnp.dot(x, w_ref[...], preferred_element_type=jnp.float32)
    h_ref[...] = h
    stats_ref[0] = _partial_stats(h, _row_mask(h.shape, tile_b, total_b))


def bn_elu_linear_stats_kernel(total_b, tile_b, h_ref, sc_ref, sh_ref, w_ref,
                               h2_ref, stats_ref):
    # Apply BN1 (fused scale/shift) + ELU, then Linear2 + BN2 partial stats.
    a = _elu(h_ref[...] * sc_ref[...] + sh_ref[...])
    h2 = jnp.dot(a.astype(jnp.bfloat16), w_ref[...],
                 preferred_element_type=jnp.float32)
    h2_ref[...] = h2
    stats_ref[0] = _partial_stats(h2, _row_mask(h2.shape, tile_b, total_b))


def bn_elu_linear_kernel(h_ref, sc_ref, sh_ref, w_ref, b_ref, o_ref):
    # Apply BN2 + ELU, then Linear3 into a lane-padded (TB, >=128) output.
    a = _elu(h_ref[...] * sc_ref[...] + sh_ref[...])
    o = jnp.dot(a.astype(jnp.bfloat16), w_ref[...],
                preferred_element_type=jnp.float32)
    o_ref[...] = o + b_ref[...]


# ---------------- wrapper ----------------

def _scale_shift(partials, gamma, beta, n):
    # Tiny (2, H) XLA reduction over tiles; negligible vs. the matmuls.
    sums = jnp.sum(partials, axis=0)                       # (2, H)
    mean = sums[0] / n
    var = jnp.maximum(sums[1] / n - mean * mean, 0.0)      # biased (training BN)
    scale = gamma.reshape(-1) * jax.lax.rsqrt(var + _BN_EPS)
    shift = beta.reshape(-1) - mean * scale
    return scale.reshape(1, -1), shift.reshape(1, -1)


@functools.partial(jax.jit, static_argnames=("z", "block_b"))
def encoder_forward(x, params, z, block_b=1024):
    """x: (..., ze) float32. Returns (w1, w2, w3), each (B, z) float32."""
    ze, H = params["w1"].shape
    x = x.reshape(-1, ze)            # mirrors x.view(-1, ze)
    B = x.shape[0]

    tb = min(block_b, _round_up(B, 8))   # rows per batch tile (multiple of 8)
    nb = pl.cdiv(B, tb)

    cparams = pltpu.CompilerParams(
        dimension_semantics=("parallel",),     # megacore sharding on v7x
        vmem_limit_bytes=_VMEM_LIMIT_BYTES,
    )

    def row_spec(cols):
        return pl.BlockSpec((tb, cols), lambda i: (i, 0))

    def resident_spec(r, c):
        return pl.BlockSpec((r, c), lambda i: (0, 0))      # stays in VMEM

    stats_spec = pl.BlockSpec((1, 2, H), lambda i: (i, 0, 0))
    stats_shape = jax.ShapeDtypeStruct((nb, 2, H), jnp.float32)

    # --- layer 1: Linear(ze -> H) + BN1 partial statistics
    h1, st1 = pl.pallas_call(
        functools.partial(linear_stats_kernel, B, tb),
        grid=(nb,),
        in_specs=[row_spec(ze), resident_spec(ze, H)],
        out_specs=(row_spec(H), stats_spec),
        out_shape=(jax.ShapeDtypeStruct((B, H), jnp.float32), stats_shape),
        compiler_params=cparams,
    )(x, params["w1"])
    sc1, sh1 = _scale_shift(st1, params["g1"], params["be1"], B)

    # --- layer 2: BN1 apply + ELU + Linear(H -> H) + BN2 partial statistics
    h2, st2 = pl.pallas_call(
        functools.partial(bn_elu_linear_stats_kernel, B, tb),
        grid=(nb,),
        in_specs=[row_spec(H), resident_spec(1, H), resident_spec(1, H),
                  resident_spec(H, H)],
        out_specs=(row_spec(H), stats_spec),
        out_shape=(jax.ShapeDtypeStruct((B, H), jnp.float32), stats_shape),
        compiler_params=cparams,
    )(h1, sc1, sh1, params["w2"])
    sc2, sh2 = _scale_shift(st2, params["g2"], params["be2"], B)

    # --- layer 3: BN2 apply + ELU + Linear(H -> 3z), lane-padded to >=128 cols
    op = _round_up(3 * z, 128)
    w3p = jnp.zeros((H, op), params["w3"].dtype).at[:, :3 * z].set(params["w3"])
    b3p = jnp.zeros((1, op), jnp.float32).at[:, :3 * z].set(params["b3"])
    out_p = pl.pallas_call(
        bn_elu_linear_kernel,
        grid=(nb,),
        in_specs=[row_spec(H), resident_spec(1, H), resident_spec(1, H),
                  resident_spec(H, op), resident_spec(1, op)],
        out_specs=row_spec(op),
        out_shape=jax.ShapeDtypeStruct((B, op), jnp.float32),
        compiler_params=cparams,
    )(h2, sc2, sh2, w3p, b3p)

    out = out_p[:, :3 * z]           # free XLA slice of the lane-padded store
    return out[:, 0 * z:1 * z], out[:, 1 * z:2 * z], out[:, 2 * z:3 * z]


# ---------------- params / reference ----------------

def init_params(key, ze, z, hidden=_HIDDEN):
    """Synthetic params with nn.Linear / nn.BatchNorm1d shapes (weights in bf16)."""
    ks = jax.random.split(key, 3)

    def lin(k, fan_in, fan_out):
        bound = 1.0 / jnp.sqrt(fan_in)
        kw, kb = jax.random.split(k)
        w = jax.random.uniform(kw, (fan_in, fan_out), jnp.float32, -bound, bound)
        b = jax.random.uniform(kb, (1, fan_out), jnp.float32, -bound, bound)
        return w.astype(jnp.bfloat16), b

    w1, b1 = lin(ks[0], ze, hidden)
    w2, b2 = lin(ks[1], hidden, hidden)
    w3, b3 = lin(ks[2], hidden, 3 * z)
    ones = jnp.ones((1, hidden), jnp.float32)
    zeros = jnp.zeros((1, hidden), jnp.float32)
    return dict(w1=w1, b1=b1, g1=ones, be1=zeros,
                w2=w2, b2=b2, g2=ones, be2=zeros,
                w3=w3, b3=b3)


def reference_forward(x, params):
    """Pure-JAX reference with the FULL PyTorch semantics (including b1/b2),
    using bf16 matmul inputs + f32 accumulation like the kernel."""
    def mm(a, w):
        return jnp.dot(a.astype(jnp.bfloat16), w.astype(jnp.bfloat16),
                       preferred_element_type=jnp.float32)

    def bn(h, gamma, beta):
        mean = jnp.mean(h, axis=0, keepdims=True)
        var = jnp.mean((h - mean) * (h - mean), axis=0, keepdims=True)
        return (h - mean) * jax.lax.rsqrt(var + _BN_EPS) * gamma + beta

    h = mm(x, params["w1"]) + params["b1"]
    h = _elu(bn(h, params["g1"], params["be1"]))
    h = mm(h, params["w2"]) + params["b2"]
    h = _elu(bn(h, params["g2"], params["be2"]))
    out = mm(h, params["w3"]) + params["b3"]
    z = out.shape[1] // 3
    return out[:, :z], out[:, z:2 * z], out[:, 2 * z:]


if __name__ == "__main__":
    ze, z = 32, 16
    key = jax.random.PRNGKey(0)
    kx, kp, kx2 = jax.random.split(key, 3)
    params = init_params(kp, ze, z)

    # --- small case (single tile) ---
    B = 8
    x = jax.random.normal(kx, (B, ze), jnp.float32)
    w1, w2, w3 = encoder_forward(x, params, z)
    jax.block_until_ready((w1, w2, w3))
    r1, r2, r3 = reference_forward(x, params)
    assert w1.shape == (B, z) and w2.shape == (B, z) and w3.shape == (B, z)
    assert jnp.allclose(w1, r1, atol=2e-2, rtol=2e-2)
    assert jnp.allclose(w2, r2, atol=2e-2, rtol=2e-2)
    assert jnp.allclose(w3, r3, atol=2e-2, rtol=2e-2)

    # --- multi-tile case with a ragged last tile: exercises the batch grid,
    #     resident weights and row-masked BN partial statistics ---
    B2 = 200
    x2 = jax.random.normal(kx2, (B2, ze), jnp.float32)
    v1, v2, v3 = encoder_forward(x2, params, z, block_b=128)
    jax.block_until_ready((v1, v2, v3))
    s1, s2, s3 = reference_forward(x2, params)
    assert v1.shape == (B2, z) and v2.shape == (B2, z) and v3.shape == (B2, z)
    assert jnp.allclose(v1, s1, atol=2e-2, rtol=2e-2)
    assert jnp.allclose(v2, s2, atol=2e-2, rtol=2e-2)
    assert jnp.allclose(v3, s3, atol=2e-2, rtol=2e-2)

    print("KERNEL_OK")
</pallas_src>

<mosaic_0001>
module attributes {stable_mosaic.version = 11 : i64} {
  func.func @linear_stats_kernel(%arg0: i32, %arg1: memref<8x32xf32, #tpu.memory_space<vmem>>, %arg2: memref<32x512xbf16, #tpu.memory_space<vmem>>, %arg3: memref<8x512xf32, #tpu.memory_space<vmem>>, %arg4: memref<1x2x512xf32, #tpu.memory_space<vmem>>) attributes {dimension_semantics = [#tpu.dimension_semantics<parallel>], iteration_bounds = array<i64: 1>, scalar_prefetch = 0 : i64, scratch_operands = 0 : i64, tpu.core_type = #tpu.core_type<tc>, window_params = [{transform_indices = @transform_0, window_bounds = array<i64: 8, 32>}, {pipeline_mode = #tpu.pipeline_mode<synchronous>, transform_indices = @transform_1, window_bounds = array<i64: 32, 512>}, {transform_indices = @transform_2, window_bounds = array<i64: 8, 512>}, {transform_indices = @transform_3, window_bounds = array<i64: 1, 2, 512>}]} {
    %c0 = arith.constant 0 : index
    %c0_0 = arith.constant 0 : index
    %0 = vector.load %arg1[%c0, %c0_0] : memref<8x32xf32, #tpu.memory_space<vmem>>, vector<8x32xf32>
    %1 = arith.truncf %0 : vector<8x32xf32> to vector<8x32xbf16>
    %c0_1 = arith.constant 0 : index
    %c0_2 = arith.constant 0 : index
    %2 = vector.load %arg2[%c0_1, %c0_2] : memref<32x512xbf16, #tpu.memory_space<vmem>>, vector<32x512xbf16>
    %cst = arith.constant dense<0.000000e+00> : vector<8x512xf32>
    %3 = tpu.matmul %1, %2, %cst {dimension_numbers = #tpu.dot_dimension_numbers<[1], [0], [0], [1], [0, 0, 1, 1], [], []>} : vector<8x32xbf16>, vector<32x512xbf16>, vector<8x512xf32> -> vector<8x512xf32>
    %c0_3 = arith.constant 0 : index
    %c0_4 = arith.constant 0 : index
    %4 = vector.load %arg3[%c0_3, %c0_4] : memref<8x512xf32, #tpu.memory_space<vmem>>, vector<8x512xf32>
    tpu.vector_store %arg3[%c0_3, %c0_4], %3 {strides = array<i32>} : memref<8x512xf32, #tpu.memory_space<vmem>>, vector<8x512xf32>,
    %5 = tpu.iota {dimensions = array<i32: 0>} : vector<8x512xi32>
    %c8_i32 = arith.constant 8 : i32
    %6 = arith.muli %arg0, %c8_i32 : i32
    %7 = vector.broadcast %6 : i32 to vector<8x512xi32>
    %8 = arith.addi %5, %7 : vector<8x512xi32>
    %c8_i32_5 = arith.constant 8 : i32
    %9 = vector.broadcast %c8_i32_5 : i32 to vector<8x512xi32>
    %10 = arith.cmpi slt, %8, %9 : vector<8x512xi32>
    %cst_6 = arith.constant 0.000000e+00 : f32
    %11 = vector.broadcast %cst_6 : f32 to vector<8x512xf32>
    %12 = arith.select %10, %3, %11 : vector<8x512xi1>, vector<8x512xf32>
    %cst_7 = arith.constant dense<0.000000e+00> : vector<512xf32>
    %13 = vector.multi_reduction <add>, %12, %cst_7 [0] : vector<8x512xf32> to vector<512xf32>
    %14 = vector.shape_cast %13 : vector<512xf32> to vector<1x512xf32>
    %15 = arith.mulf %12, %12 : vector<8x512xf32>
    %cst_8 = arith.constant dense<0.000000e+00> : vector<512xf32>
    %16 = vector.multi_reduction <add>, %15, %cst_8 [0] : vector<8x512xf32> to vector<512xf32>
    %17 = vector.shape_cast %16 : vector<512xf32> to vector<1x512xf32>
    %18 = tpu.concatenate %14, %17 in 0 : vector<1x512xf32>, vector<1x512xf32> -> vector<2x512xf32>
    %c0_9 = arith.constant 0 : index
    %c0_10 = arith.constant 0 : index
    %c0_11 = arith.constant 0 : index
    %19 = vector.load %arg4[%c0_9, %c0_10, %c0_11] : memref<1x2x512xf32, #tpu.memory_space<vmem>>, vector<1x2x512xf32>
    %20 = vector.shape_cast %19 : vector<1x2x512xf32> to vector<2x512xf32>
    %21 = vector.shape_cast %18 : vector<2x512xf32> to vector<1x2x512xf32>
    tpu.vector_store %arg4[%c0_9, %c0_10, %c0_11], %21 {strides = array<i32>} : memref<1x2x512xf32, #tpu.memory_space<vmem>>, vector<1x2x512xf32>,
    return
  }
  func.func @transform_0(%arg0: i32) -> (i32, i32) {
    %c0_i32 = arith.constant 0 : i32
    %c0_i32_0 = arith.constant 0 : i32
    return %arg0, %c0_i32 : i32, i32
  }
  func.func @transform_1(%arg0: i32) -> (i32, i32) {
    %c0_i32 = arith.constant 0 : i32
    %c0_i32_0 = arith.constant 0 : i32
    %c0_i32_1 = arith.constant 0 : i32
    return %c0_i32, %c0_i32_0 : i32, i32
  }
  func.func @transform_2(%arg0: i32) -> (i32, i32) {
    %c0_i32 = arith.constant 0 : i32
    %c0_i32_0 = arith.constant 0 : i32
    return %arg0, %c0_i32 : i32, i32
  }
  func.func @transform_3(%arg0: i32) -> (i32, i32, i32) {
    %c0_i32 = arith.constant 0 : i32
    %c0_i32_0 = arith.constant 0 : i32
    %c0_i32_1 = arith.constant 0 : i32
    return %arg0, %c0_i32, %c0_i32_0 : i32, i32, i32
  }
}

module attributes {stable_mosaic.version = 11 : i64} {
  func.func @bn_elu_linear_stats_kernel(%arg0: i32, %arg1: memref<8x512xf32, #tpu.memory_space<vmem>>, %arg2: memref<1x512xf32, #tpu.memory_space<vmem>>, %arg3: memref<1x512xf32, #tpu.memory_space<vmem>>, %arg4: memref<512x512xbf16, #tpu.memory_space<vmem>>, %arg5: memref<8x512xf32, #tpu.memory_space<vmem>>, %arg6: memref<1x2x512xf32, #tpu.memory_space<vmem>>) attributes {dimension_semantics = [#tpu.dimension_semantics<parallel>], iteration_bounds = array<i64: 1>, scalar_prefetch = 0 : i64, scratch_operands = 0 : i64, tpu.core_type = #tpu.core_type<tc>, window_params = [{transform_indices = @transform_0, window_bounds = array<i64: 8, 512>}, {pipeline_mode = #tpu.pipeline_mode<synchronous>, transform_indices = @transform_1, window_bounds = array<i64: 1, 512>}, {pipeline_mode = #tpu.pipeline_mode<synchronous>, transform_indices = @transform_2, window_bounds = array<i64: 1, 512>}, {pipeline_mode = #tpu.pipeline_mode<synchronous>, transform_indices = @transform_3, window_bounds = array<i64: 512, 512>}, {transform_indices = @transform_4, window_bounds = array<i64: 8, 512>}, {transform_indices = @transform_5, window_bounds = array<i64: 1, 2, 512>}]} {
    %c0 = arith.constant 0 : index
    %c0_0 = arith.constant 0 : index
    %0 = vector.load %arg1[%c0, %c0_0] : memref<8x512xf32, #tpu.memory_space<vmem>>, vector<8x512xf32>
    %c0_1 = arith.constant 0 : index
    %c0_2 = arith.constant 0 : index
    %1 = vector.load %arg2[%c0_1, %c0_2] : memref<1x512xf32, #tpu.memory_space<vmem>>, vector<1x512xf32>
    %2 = vector.broadcast %1 : vector<1x512xf32> to vector<8x512xf32>
    %3 = arith.mulf %0, %2 : vector<8x512xf32>
    %c0_3 = arith.constant 0 : index
    %c0_4 = arith.constant 0 : index
    %4 = vector.load %arg3[%c0_3, %c0_4] : memref<1x512xf32, #tpu.memory_space<vmem>>, vector<1x512xf32>
    %5 = vector.broadcast %4 : vector<1x512xf32> to vector<8x512xf32>
    %6 = arith.addf %3, %5 : vector<8x512xf32>
    %cst = arith.constant 0.000000e+00 : f32
    %7 = vector.broadcast %cst : f32 to vector<8x512xf32>
    %8 = arith.minimumf %6, %7 : vector<8x512xf32>
    %9 = math.exp %8 : vector<8x512xf32>
    %cst_5 = arith.constant 0.000000e+00 : f32
    %10 = vector.broadcast %cst_5 : f32 to vector<8x512xf32>
    %11 = arith.cmpf ogt, %6, %10 : vector<8x512xf32>
    %cst_6 = arith.constant 1.000000e+00 : f32
    %12 = vector.broadcast %cst_6 : f32 to vector<8x512xf32>
    %13 = arith.subf %9, %12 : vector<8x512xf32>
    %14 = arith.select %11, %6, %13 : vector<8x512xi1>, vector<8x512xf32>
    %15 = arith.truncf %14 : vector<8x512xf32> to vector<8x512xbf16>
    %c0_7 = arith.constant 0 : index
    %c0_8 = arith.constant 0 : index
    %16 = vector.load %arg4[%c0_7, %c0_8] : memref<512x512xbf16, #tpu.memory_space<vmem>>, vector<512x512xbf16>
    %cst_9 = arith.constant dense<0.000000e+00> : vector<8x512xf32>
    %17 = tpu.matmul %15, %16, %cst_9 {dimension_numbers = #tpu.dot_dimension_numbers<[1], [0], [0], [1], [0, 0, 1, 1], [], []>} : vector<8x512xbf16>, vector<512x512xbf16>, vector<8x512xf32> -> vector<8x512xf32>
    %c0_10 = arith.constant 0 : index
    %c0_11 = arith.constant 0 : index
    %18 = vector.load %arg5[%c0_10, %c0_11] : memref<8x512xf32, #tpu.memory_space<vmem>>, vector<8x512xf32>
    tpu.vector_store %arg5[%c0_10, %c0_11], %17 {strides = array<i32>} : memref<8x512xf32, #tpu.memory_space<vmem>>, vector<8x512xf32>,
    %19 = tpu.iota {dimensions = array<i32: 0>} : vector<8x512xi32>
    %c8_i32 = arith.constant 8 : i32
    %20 = arith.muli %arg0, %c8_i32 : i32
    %21 = vector.broadcast %20 : i32 to vector<8x512xi32>
    %22 = arith.addi %19, %21 : vector<8x512xi32>
    %c8_i32_12 = arith.constant 8 : i32
    %23 = vector.broadcast %c8_i32_12 : i32 to vector<8x512xi32>
    %24 = arith.cmpi slt, %22, %23 : vector<8x512xi32>
    %cst_13 = arith.constant 0.000000e+00 : f32
    %25 = vector.broadcast %cst_13 : f32 to vector<8x512xf32>
    %26 = arith.select %24, %17, %25 : vector<8x512xi1>, vector<8x512xf32>
    %cst_14 = arith.constant dense<0.000000e+00> : vector<512xf32>
    %27 = vector.multi_reduction <add>, %26, %cst_14 [0] : vector<8x512xf32> to vector<512xf32>
    %28 = vector.shape_cast %27 : vector<512xf32> to vector<1x512xf32>
    %29 = arith.mulf %26, %26 : vector<8x512xf32>
    %cst_15 = arith.constant dense<0.000000e+00> : vector<512xf32>
    %30 = vector.multi_reduction <add>, %29, %cst_15 [0] : vector<8x512xf32> to vector<512xf32>
    %31 = vector.shape_cast %30 : vector<512xf32> to vector<1x512xf32>
    %32 = tpu.concatenate %28, %31 in 0 : vector<1x512xf32>, vector<1x512xf32> -> vector<2x512xf32>
    %c0_16 = arith.constant 0 : index
    %c0_17 = arith.constant 0 : index
    %c0_18 = arith.constant 0 : index
    %33 = vector.load %arg6[%c0_16, %c0_17, %c0_18] : memref<1x2x512xf32, #tpu.memory_space<vmem>>, vector<1x2x512xf32>
    %34 = vector.shape_cast %33 : vector<1x2x512xf32> to vector<2x512xf32>
    %35 = vector.shape_cast %32 : vector<2x512xf32> to vector<1x2x512xf32>
    tpu.vector_store %arg6[%c0_16, %c0_17, %c0_18], %35 {strides = array<i32>} : memref<1x2x512xf32, #tpu.memory_space<vmem>>, vector<1x2x512xf32>,
    return
  }
  func.func @transform_0(%arg0: i32) -> (i32, i32) {
    %c0_i32 = arith.constant 0 : i32
    %c0_i32_0 = arith.constant 0 : i32
    return %arg0, %c0_i32 : i32, i32
  }
  func.func @transform_1(%arg0: i32) -> (i32, i32) {
    %c0_i32 = arith.constant 0 : i32
    %c0_i32_0 = arith.constant 0 : i32
    %c0_i32_1 = arith.constant 0 : i32
    return %c0_i32, %c0_i32_0 : i32, i32
  }
  func.func @transform_2(%arg0: i32) -> (i32, i32) {
    %c0_i32 = arith.constant 0 : i32
    %c0_i32_0 = arith.constant 0 : i32
    %c0_i32_1 = arith.constant 0 : i32
    return %c0_i32, %c0_i32_0 : i32, i32
  }
  func.func @transform_3(%arg0: i32) -> (i32, i32) {
    %c0_i32 = arith.constant 0 : i32
    %c0_i32_0 = arith.constant 0 : i32
    %c0_i32_1 = arith.constant 0 : i32
    return %c0_i32, %c0_i32_0 : i32, i32
  }
  func.func @transform_4(%arg0: i32) -> (i32, i32) {
    %c0_i32 = arith.constant 0 : i32
    %c0_i32_0 = arith.constant 0 : i32
    return %arg0, %c0_i32 : i32, i32
  }
  func.func @transform_5(%arg0: i32) -> (i32, i32, i32) {
    %c0_i32 = arith.constant 0 : i32
    %c0_i32_0 = arith.constant 0 : i32
    %c0_i32_1 = arith.constant 0 : i32
    return %arg0, %c0_i32, %c0_i32_0 : i32, i32, i32
  }
}

module attributes {stable_mosaic.version = 11 : i64} {
  func.func @bn_elu_linear_kernel(%arg0: i32, %arg1: memref<8x512xf32, #tpu.memory_space<vmem>>, %arg2: memref<1x512xf32, #tpu.memory_space<vmem>>, %arg3: memref<1x512xf32, #tpu.memory_space<vmem>>, %arg4: memref<512x128xbf16, #tpu.memory_space<vmem>>, %arg5: memref<1x128xf32, #tpu.memory_space<vmem>>, %arg6: memref<8x128xf32, #tpu.memory_space<vmem>>) attributes {dimension_semantics = [#tpu.dimension_semantics<parallel>], iteration_bounds = array<i64: 1>, scalar_prefetch = 0 : i64, scratch_operands = 0 : i64, tpu.core_type = #tpu.core_type<tc>, window_params = [{transform_indices = @transform_0, window_bounds = array<i64: 8, 512>}, {pipeline_mode = #tpu.pipeline_mode<synchronous>, transform_indices = @transform_1, window_bounds = array<i64: 1, 512>}, {pipeline_mode = #tpu.pipeline_mode<synchronous>, transform_indices = @transform_2, window_bounds = array<i64: 1, 512>}, {pipeline_mode = #tpu.pipeline_mode<synchronous>, transform_indices = @transform_3, window_bounds = array<i64: 512, 128>}, {pipeline_mode = #tpu.pipeline_mode<synchronous>, transform_indices = @transform_4, window_bounds = array<i64: 1, 128>}, {transform_indices = @transform_5, window_bounds = array<i64: 8, 128>}]} {
    %c0 = arith.constant 0 : index
    %c0_0 = arith.constant 0 : index
    %0 = vector.load %arg1[%c0, %c0_0] : memref<8x512xf32, #tpu.memory_space<vmem>>, vector<8x512xf32>
    %c0_1 = arith.constant 0 : index
    %c0_2 = arith.constant 0 : index
    %1 = vector.load %arg2[%c0_1, %c0_2] : memref<1x512xf32, #tpu.memory_space<vmem>>, vector<1x512xf32>
    %2 = vector.broadcast %1 : vector<1x512xf32> to vector<8x512xf32>
    %3 = arith.mulf %0, %2 : vector<8x512xf32>
    %c0_3 = arith.constant 0 : index
    %c0_4 = arith.constant 0 : index
    %4 = vector.load %arg3[%c0_3, %c0_4] : memref<1x512xf32, #tpu.memory_space<vmem>>, vector<1x512xf32>
    %5 = vector.broadcast %4 : vector<1x512xf32> to vector<8x512xf32>
    %6 = arith.addf %3, %5 : vector<8x512xf32>
    %cst = arith.constant 0.000000e+00 : f32
    %7 = vector.broadcast %cst : f32 to vector<8x512xf32>
    %8 = arith.minimumf %6, %7 : vector<8x512xf32>
    %9 = math.exp %8 : vector<8x512xf32>
    %cst_5 = arith.constant 0.000000e+00 : f32
    %10 = vector.broadcast %cst_5 : f32 to vector<8x512xf32>
    %11 = arith.cmpf ogt, %6, %10 : vector<8x512xf32>
    %cst_6 = arith.constant 1.000000e+00 : f32
    %12 = vector.broadcast %cst_6 : f32 to vector<8x512xf32>
    %13 = arith.subf %9, %12 : vector<8x512xf32>
    %14 = arith.select %11, %6, %13 : vector<8x512xi1>, vector<8x512xf32>
    %15 = arith.truncf %14 : vector<8x512xf32> to vector<8x512xbf16>
    %c0_7 = arith.constant 0 : index
    %c0_8 = arith.constant 0 : index
    %16 = vector.load %arg4[%c0_7, %c0_8] : memref<512x128xbf16, #tpu.memory_space<vmem>>, vector<512x128xbf16>
    %cst_9 = arith.constant dense<0.000000e+00> : vector<8x128xf32>
    %17 = tpu.matmul %15, %16, %cst_9 {dimension_numbers = #tpu.dot_dimension_numbers<[1], [0], [0], [1], [0, 0, 1, 1], [], []>} : vector<8x512xbf16>, vector<512x128xbf16>, vector<8x128xf32> -> vector<8x128xf32>
    %c0_10 = arith.constant 0 : index
    %c0_11 = arith.constant 0 : index
    %18 = vector.load %arg5[%c0_10, %c0_11] : memref<1x128xf32, #tpu.memory_space<vmem>>, vector<1x128xf32>
    %19 = vector.broadcast %18 : vector<1x128xf32> to vector<8x128xf32>
    %20 = arith.addf %17, %19 : vector<8x128xf32>
    %c0_12 = arith.constant 0 : index
    %c0_13 = arith.constant 0 : index
    %21 = vector.load %arg6[%c0_12, %c0_13] : memref<8x128xf32, #tpu.memory_space<vmem>>, vector<8x128xf32>
    tpu.vector_store %arg6[%c0_12, %c0_13], %20 {strides = array<i32>} : memref<8x128xf32, #tpu.memory_space<vmem>>, vector<8x128xf32>,
    return
  }
  func.func @transform_0(%arg0: i32) -> (i32, i32) {
    %c0_i32 = arith.constant 0 : i32
    %c0_i32_0 = arith.constant 0 : i32
    return %arg0, %c0_i32 : i32, i32
  }
  func.func @transform_1(%arg0: i32) -> (i32, i32) {
    %c0_i32 = arith.constant 0 : i32
    %c0_i32_0 = arith.constant 0 : i32
    %c0_i32_1 = arith.constant 0 : i32
    return %c0_i32, %c0_i32_0 : i32, i32
  }
  func.func @transform_2(%arg0: i32) -> (i32, i32) {
    %c0_i32 = arith.constant 0 : i32
    %c0_i32_0 = arith.constant 0 : i32
    %c0_i32_1 = arith.constant 0 : i32
    return %c0_i32, %c0_i32_0 : i32, i32
  }
  func.func @transform_3(%arg0: i32) -> (i32, i32) {
    %c0_i32 = arith.constant 0 : i32
    %c0_i32_0 = arith.constant 0 : i32
    %c0_i32_1 = arith.constant 0 : i32
    return %c0_i32, %c0_i32_0 : i32, i32
  }
  func.func @transform_4(%arg0: i32) -> (i32, i32) {
    %c0_i32 = arith.constant 0 : i32
    %c0_i32_0 = arith.constant 0 : i32
    %c0_i32_1 = arith.constant 0 : i32
    return %c0_i32, %c0_i32_0 : i32, i32
  }
  func.func @transform_5(%arg0: i32) -> (i32, i32) {
    %c0_i32 = arith.constant 0 : i32
    %c0_i32_0 = arith.constant 0 : i32
    return %arg0, %c0_i32 : i32, i32
  }
}

</mosaic_0001>

<llo_original>
// kernel: encoder_forward.3
$region0: #{encoder_forward.3}
  #allocation0 [shape = 'u32[]', space=smem, size = 0x4, offset = 0x4, fixed_abs, tag = 'smem constant byte address 0x4 - core index']
  #allocation1 [shape = 'u32[72,128]{1,0:T(1,128)}', space=vmem, size = 0x9000, scoped, tag = 'internal scratch']
  %s0 = inlined_call_operand.hbm [shape: f32[8,32], index: 0, kind: input, shape index: {}]
  %s1 = inlined_call_operand.hbm [shape: bf16[32,512], index: 1, kind: input, shape index: {}]
  %s2 = inlined_call_operand.vmem [shape: f32[8,512], index: 2, kind: output, shape index: {0}]
  %s3 = inlined_call_operand.vmem [shape: f32[1,2,512], index: 3, kind: output, shape index: {1}]
  %4 = xla_tuple %s2, %s3
  %s5 = sld [smem:[#allocation0]]
  $region34: #{encoder_forward.3} parent=0
    _
  %s7 = ssub.s32 1, %s5
  %s8 = scalar_select 0, %s7, %s5
  $region1: #{encoder_forward.3} parent=0
    #allocation2 [shape = 'u8[4096]{0}', space=vmem, size = 0x1000, scoped, tag = 'input window, operand 0, single buffered']
    #allocation3 [shape = 's32[1]{0}', space=sflag, size = 0x4, scoped, tag = 'scoped memory for encoder_forward.3']
    #allocation4 [shape = 'u8[32768]{0}', space=vmem, size = 0x8000, scoped, tag = 'input window, operand 1, single buffered']
    #allocation5 [shape = 's32[1]{0}', space=sflag, size = 0x4, scoped, tag = 'scoped memory for encoder_forward.3']
    %9 = vsyncpa [#allocation3], 0
    %10 = vsyncpa [#allocation5], 0
    // Predicated region
    $region2: #{encoder_forward.3} parent=1 // pred_check
      _
    $region3: #{encoder_forward.3} parent=1 // pred_check_branch
      %12 = sbr.rel (0) target = $region5
    $region4: #{encoder_forward.3} parent=1 // pred_region
      %14 = vsyncadd [#allocation3], 0
      %s16 = sshll.u32 %s0, 4
      %s17 = int_to_ptr.hbm [resolvable:$true] %s16
      %s18 = sshll.u32 [#allocation2], 4
      %s19 = int_to_ptr.vmem [resolvable:$true] %s18
      %21 = dma.hbm_to_vmem [thread:$0]  %s17, 128, %s19, [#allocation3]
    $region5: #{encoder_forward.3} parent=1 // pred_fallthru
      _
    // Predicated region
    $region6: #{encoder_forward.3} parent=1 // pred_check
      _
    $region7: #{encoder_forward.3} parent=1 // pred_check_branch
      %23 = sbr.rel (0) target = $region9
    $region8: #{encoder_forward.3} parent=1 // pred_region
      %25 = vsyncadd [#allocation5], 0
      %s26 = sshll.u32 %s1, 4
      %s27 = int_to_ptr.hbm [resolvable:$true] %s26
      %s28 = sshll.u32 [#allocation4], 4
      %s29 = int_to_ptr.vmem [resolvable:$true] %s28
      %34 = dma.hbm_to_vmem [thread:$0]  %s27, 1024, %s29, [#allocation5], 256, 256, 16
    $region9: #{encoder_forward.3} parent=1 // pred_fallthru
      _
    // Predicated region
    $region10: #{encoder_forward.3} parent=1 // pred_check
      _
    $region11: #{encoder_forward.3} parent=1 // pred_check_branch
      %36 = sbr.rel (0) target = $region13
    $region12: #{encoder_forward.3} parent=1 // pred_region
      %38 = dma.done [#allocation3], 128
    $region13: #{encoder_forward.3} parent=1 // pred_fallthru
      _
    // Predicated region
    $region14: #{encoder_forward.3} parent=1 // pred_check
      _
    $region15: #{encoder_forward.3} parent=1 // pred_check_branch
      %40 = sbr.rel (0) target = $region17
    $region16: #{encoder_forward.3} parent=1 // pred_region
      %42 = dma.done [#allocation5], 1024
    $region17: #{encoder_forward.3} parent=1 // pred_fallthru
      _
    %v44 = vld [vmem:[#allocation2] sm:$0xff]
    %v45 = vpack.c.bf16 %v44, %v44
    %v46 = vld [vmem:[#allocation4] sm:$0xff]
    %v47 = vld [vmem:[#allocation4 + $0x8] sm:$0xff]
    %v48 = vld [vmem:[#allocation4 + $0x10] sm:$0xff]
    %v49 = vld [vmem:[#allocation4 + $0x18] sm:$0xff]
    %v50 = vld [vmem:[#allocation4 + $0x20] sm:$0xff]
    %v51 = vld [vmem:[#allocation4 + $0x28] sm:$0xff]
    %v52 = vld [vmem:[#allocation4 + $0x30] sm:$0xff]
    %v53 = vld [vmem:[#allocation4 + $0x38] sm:$0xff]
    %v62 = vunpack.c.l.b16 %v46
    %v63 = vunpack.c.h.b16 %v46
    %v64 = vunpack.c.l.b16 %v47
    %v65 = vunpack.c.h.b16 %v47
    %v66 = vunpack.c.l.b16 %v48
    %v67 = vunpack.c.h.b16 %v48
    %v68 = vunpack.c.l.b16 %v49
    %v69 = vunpack.c.h.b16 %v49
    %v70 = vunpack.c.l.b16 %v50
    %v71 = vunpack.c.h.b16 %v50
    %v72 = vunpack.c.l.b16 %v51
    %v73 = vunpack.c.h.b16 %v51
    %v74 = vunpack.c.l.b16 %v52
    %v75 = vunpack.c.h.b16 %v52
    %v76 = vunpack.c.l.b16 %v53
    %v77 = vunpack.c.h.b16 %v53
    %v78 = vpack.c.b16 %v66, %v62
    %v79 = vpack.c.b16 %v67, %v63
    %v80 = vpack.c.b16 %v68, %v64
    %v81 = vpack.c.b16 %v69, %v65
    %v82 = vpack.c.b16 %v74, %v70
    %v83 = vpack.c.b16 %v75, %v71
    %v84 = vpack.c.b16 %v76, %v72
    %v85 = vpack.c.b16 %v77, %v73
    %vm94 = vcmask 261120
    %v96 = vsel %vm94, %v45, 0
    %98 = vmatpush.bf16.msra.mxu0 0
    %99 = vmatpush.bf16.msra.mxu0 0
    %100 = vmatpush.bf16.msra.mxu0 0
    %101 = vmatpush.bf16.msra.mxu0 0
    %102 = vmatpush.bf16.msra.mxu0 0
    %103 = vmatpush.bf16.msra.mxu0 0
    %104 = vmatpush.bf16.msra.mxu0 %v82
    %105 = vmatpush.bf16.msra.mxu0 %v78
    %106 = vmatmul.bf16.gmra.mxu0 %v96
    %v107 = vpop.f32.mrf.mxu0
    %v108 = vadd.f32 0.0, %v107
    %v109 = vpop.f32.mrf.mxu0
    %110 = vdwg.mxu0
    %111 = vmatpush.bf16.msra.mxu0 0
    %112 = vmatpush.bf16.msra.mxu0 0
    %113 = vmatpush.bf16.msra.mxu0 0
    %114 = vmatpush.bf16.msra.mxu0 0
    %115 = vmatpush.bf16.msra.mxu0 0
    %116 = vmatpush.bf16.msra.mxu0 0
    %117 = vmatpush.bf16.msra.mxu0 %v83
    %118 = vmatpush.bf16.msra.mxu0 %v79
    %119 = vmatmul.bf16.gmra.mxu0 %v96
    %v120 = vpop.f32.mrf.mxu0
    %v121 = vadd.f32 0.0, %v120
    %v122 = vpop.f32.mrf.mxu0
    %123 = vdwg.mxu0
    %124 = vmatpush.bf16.msra.mxu0 0
    %125 = vmatpush.bf16.msra.mxu0 0
    %126 = vmatpush.bf16.msra.mxu0 0
    %127 = vmatpush.bf16.msra.mxu0 0
    %128 = vmatpush.bf16.msra.mxu0 0
    %129 = vmatpush.bf16.msra.mxu0 0
    %130 = vmatpush.bf16.msra.mxu0 %v84
    %131 = vmatpush.bf16.msra.mxu0 %v80
    %132 = vmatmul.bf16.gmra.mxu0 %v96
    %v133 = vpop.f32.mrf.mxu0
    %v134 = vadd.f32 0.0, %v133
    %v135 = vpop.f32.mrf.mxu0
    %136 = vdwg.mxu0
    %137 = vmatpush.bf16.msra.mxu0 0
    %138 = vmatpush.bf16.msra.mxu0 0
    %139 = vmatpush.bf16.msra.mxu0 0
    %140 = vmatpush.bf16.msra.mxu0 0
    %141 = vmatpush.bf16.msra.mxu0 0
    %142 = vmatpush.bf16.msra.mxu0 0
    %143 = vmatpush.bf16.msra.mxu0 %v85
    %144 = vmatpush.bf16.msra.mxu0 %v81
    %145 = vmatmul.bf16.gmra.mxu0 %v96
    %v146 = vpop.f32.mrf.mxu0
    %v147 = vadd.f32 0.0, %v146
    %v148 = vpop.f32.mrf.mxu0
    %149 = vdwg.mxu0
    %150 = vst [vmem:[%s2] sm:$0xff] %v108
    %151 = vst [vmem:[%s2 + $0x8] sm:$0xff] %v121
    %152 = vst [vmem:[%s2 + $0x10] sm:$0xff] %v134
    %153 = vst [vmem:[%s2 + $0x18] sm:$0xff] %v147
    %v154 = vlaneseq
    %v155 = vshrl.u32 %v154, 7
    %s156 = smul.u32 0, 8
    %v157 = vstv %s156
    %v158 = vadd.s32 %v155, %v157
    %vm159 = vcmp.lt.s32.totalorder %v158, 8
    %v160 = vsel %vm159, %v108, 0.0
    %v161 = vsel %vm159, %v121, 0.0
    %v162 = vsel %vm159, %v134, 0.0
    %v163 = vsel %vm159, %v147, 0.0
    %v164 = vrot.slane %v160, 4
    %v165 = vadd.f32 %v160, %v164
    %v166 = vrot.slane %v165, 2
    %v167 = vadd.f32 %v165, %v166
    %v168 = vrot.slane %v167, 1
    %v169 = vadd.f32 %v167, %v168
    %v170 = vrot.slane %v161, 4
    %v171 = vadd.f32 %v161, %v170
    %v172 = vrot.slane %v171, 2
    %v173 = vadd.f32 %v171, %v172
    %v174 = vrot.slane %v173, 1
    %v175 = vadd.f32 %v173, %v174
    %v176 = vrot.slane %v162, 4
    %v177 = vadd.f32 %v162, %v176
    %v178 = vrot.slane %v177, 2
    %v179 = vadd.f32 %v177, %v178
    %v180 = vrot.slane %v179, 1
    %v181 = vadd.f32 %v179, %v180
    %v182 = vrot.slane %v163, 4
    %v183 = vadd.f32 %v163, %v182
    %v184 = vrot.slane %v183, 2
    %v185 = vadd.f32 %v183, %v184
    %v186 = vrot.slane %v185, 1
    %v187 = vadd.f32 %v185, %v186
    %v188 = vmul.f32 %v160, %v160
    %v189 = vmul.f32 %v161, %v161
    %v190 = vmul.f32 %v162, %v162
    %v191 = vmul.f32 %v163, %v163
    %v192 = vrot.slane %v188, 4
    %v193 = vadd.f32 %v188, %v192
    %v194 = vrot.slane %v193, 2
    %v195 = vadd.f32 %v193, %v194
    %v196 = vrot.slane %v195, 1
    %v197 = vadd.f32 %v195, %v196
    %v198 = vrot.slane %v189, 4
    %v199 = vadd.f32 %v189, %v198
    %v200 = vrot.slane %v199, 2
    %v201 = vadd.f32 %v199, %v200
    %v202 = vrot.slane %v201, 1
    %v203 = vadd.f32 %v201, %v202
    %v204 = vrot.slane %v190, 4
    %v205 = vadd.f32 %v190, %v204
    %v206 = vrot.slane %v205, 2
    %v207 = vadd.f32 %v205, %v206
    %v208 = vrot.slane %v207, 1
    %v209 = vadd.f32 %v207, %v208
    %v210 = vrot.slane %v191, 4
    %v211 = vadd.f32 %v191, %v210
    %v212 = vrot.slane %v211, 2
    %v213 = vadd.f32 %v211, %v212
    %v214 = vrot.slane %v213, 1
    %v215 = vadd.f32 %v213, %v214
    %vm216 = vcmask 1040384
    %v217 = vsel %vm216, %v169, %v197
    %v218 = vsel %vm216, %v175, %v203
    %v219 = vsel %vm216, %v181, %v209
    %v220 = vsel %vm216, %v187, %v215
    %v225 = vrot.slane %v218, 6
    %v226 = vrot.slane %v219, 4
    %v227 = vrot.slane %v220, 2
    %vm228 = vcmask 1041408
    %v229 = vsel %vm228, %v217, %v225
    %vm230 = vcmask 1045508
    %v231 = vsel %vm230, %v226, %v227
    %vm232 = vcmask 1043456
    %v233 = vsel %vm232, %v229, %v231
    %235 = vst [vmem:[%s3] sm:$0xff] %v233
    // Predicated region
    $region18: #{encoder_forward.3} parent=1 // pred_check
      _
    $region19: #{encoder_forward.3} parent=1 // pred_check_branch
      %237 = sbr.rel (0) target = $region21
    $region20: #{encoder_forward.3} parent=1 // pred_region
      _
    $region21: #{encoder_forward.3} parent=1 // pred_fallthru
      _
    // Predicated region
    $region22: #{encoder_forward.3} parent=1 // pred_check
      _
    $region23: #{encoder_forward.3} parent=1 // pred_check_branch
      %239 = sbr.rel (0) target = $region25
    $region24: #{encoder_forward.3} parent=1 // pred_region
      _
    $region25: #{encoder_forward.3} parent=1 // pred_fallthru
      _
    // Predicated region
    $region26: #{encoder_forward.3} parent=1 // pred_check
      _
    $region27: #{encoder_forward.3} parent=1 // pred_check_branch
      %241 = sbr.rel (0) target = $region29
    $region28: #{encoder_forward.3} parent=1 // pred_region
      _
    $region29: #{encoder_forward.3} parent=1 // pred_fallthru
      _
    // Predicated region
    $region30: #{encoder_forward.3} parent=1 // pred_check
      _
    $region31: #{encoder_forward.3} parent=1 // pred_check_branch
      %243 = sbr.rel (0) target = $region33
    $region32: #{encoder_forward.3} parent=1 // pred_region
      _
    $region33: #{encoder_forward.3} parent=1 // pred_fallthru
      _
    %244 = vsyncpa [#allocation3], 1
    %245 = vsyncpa [#allocation5], 1

// kernel: encoder_forward.5
$region0: #{encoder_forward.5}
  #allocation0 [shape = 'u32[]', space=smem, size = 0x4, offset = 0x4, fixed_abs, tag = 'smem constant byte address 0x4 - core index']
  #allocation1 [shape = 'u32[72,128]{1,0:T(1,128)}', space=vmem, size = 0x9000, scoped, tag = 'internal scratch']
  %s0 = inlined_call_operand.vmem [shape: f32[8,512], index: 0, kind: input, shape index: {}]
  %s1 = inlined_call_operand.vmem [shape: f32[1,512], index: 1, kind: input, shape index: {}]
  %s2 = inlined_call_operand.vmem [shape: f32[1,512], index: 2, kind: input, shape index: {}]
  %s3 = inlined_call_operand.vmem [shape: bf16[512,128], index: 3, kind: input, shape index: {}]
  %s4 = inlined_call_operand.vmem [shape: f32[1,128], index: 4, kind: input, shape index: {}]
  %s5 = inlined_call_operand.vmem [shape: f32[8,128], index: 5, kind: output, shape index: {}]
  %s6 = sld [smem:[#allocation0]]
  $region30: #{encoder_forward.5} parent=0
    _
  %s8 = ssub.s32 1, %s6
  %s9 = scalar_select 0, %s8, %s6
  // Predicated region
  $region2: #{encoder_forward.5} parent=0 // pred_check
    _
  $region3: #{encoder_forward.5} parent=0 // pred_check_branch
    %11 = sbr.rel (0) target = $region5
  $region4: #{encoder_forward.5} parent=0 // pred_region
    _
  $region5: #{encoder_forward.5} parent=0 // pred_fallthru
    _
  // Predicated region
  $region6: #{encoder_forward.5} parent=0 // pred_check
    _
  $region7: #{encoder_forward.5} parent=0 // pred_check_branch
    %13 = sbr.rel (0) target = $region9
  $region8: #{encoder_forward.5} parent=0 // pred_region
    _
  $region9: #{encoder_forward.5} parent=0 // pred_fallthru
    _
  // Predicated region
  $region10: #{encoder_forward.5} parent=0 // pred_check
    _
  $region11: #{encoder_forward.5} parent=0 // pred_check_branch
    %15 = sbr.rel (0) target = $region13
  $region12: #{encoder_forward.5} parent=0 // pred_region
    _
  $region13: #{encoder_forward.5} parent=0 // pred_fallthru
    _
  // Predicated region
  $region14: #{encoder_forward.5} parent=0 // pred_check
    _
  $region15: #{encoder_forward.5} parent=0 // pred_check_branch
    %17 = sbr.rel (0) target = $region17
  $region16: #{encoder_forward.5} parent=0 // pred_region
    _
  $region17: #{encoder_forward.5} parent=0 // pred_fallthru
    _
  // Predicated region
  $region18: #{encoder_forward.5} parent=0 // pred_check
    _
  $region19: #{encoder_forward.5} parent=0 // pred_check_branch
    %19 = sbr.rel (0) target = $region21
  $region20: #{encoder_forward.5} parent=0 // pred_region
    _
  $region21: #{encoder_forward.5} parent=0 // pred_fallthru
    _
  %v20 = vld [vmem:[%s0] sm:$0xff]
  %v21 = vld [vmem:[%s0 + $0x8] sm:$0xff]
  %v22 = vld [vmem:[%s0 + $0x10] sm:$0xff]
  %v23 = vld [vmem:[%s0 + $0x18] sm:$0xff]
  %v24 = vld [vmem:[%s1] sm:$0xf]
  %v26 = vperm.slane %v24, 0
  %v27 = vperm.slane %v24, 1
  %v28 = vperm.slane %v24, 2
  %v29 = vperm.slane %v24, 3
  %v34 = vmul.f32 %v20, %v26
  %v35 = vmul.f32 %v21, %v27
  %v36 = vmul.f32 %v22, %v28
  %v37 = vmul.f32 %v23, %v29
  %v38 = vld [vmem:[%s2] sm:$0xf]
  %v40 = vperm.slane %v38, 0
  %v41 = vperm.slane %v38, 1
  %v42 = vperm.slane %v38, 2
  %v43 = vperm.slane %v38, 3
  %v48 = vadd.f32 %v34, %v40
  %v49 = vadd.f32 %v35, %v41
  %v50 = vadd.f32 %v36, %v42
  %v51 = vadd.f32 %v37, %v43
  %v52 = vmin.f32 %v48, 0.0
  %v53 = vmin.f32 %v49, 0.0
  %v54 = vmin.f32 %v50, 0.0
  %v55 = vmin.f32 %v51, 0.0
  %v56 = vmul.f32 %v52, 1.442695
  %v57 = vpow.pop %v56
  %v58 = vmul.f32 %v53, 1.442695
  %v59 = vpow.pop %v58
  %v60 = vmul.f32 %v54, 1.442695
  %v61 = vpow.pop %v60
  %v62 = vmul.f32 %v55, 1.442695
  %v63 = vpow.pop %v62
  %vm64 = vcmp.gt.f32.partialorder %v48, 0.0
  %vm65 = vcmp.gt.f32.partialorder %v49, 0.0
  %vm66 = vcmp.gt.f32.partialorder %v50, 0.0
  %vm67 = vcmp.gt.f32.partialorder %v51, 0.0
  %v68 = vsub.f32 %v57, 1.0
  %v69 = vsub.f32 %v59, 1.0
  %v70 = vsub.f32 %v61, 1.0
  %v71 = vsub.f32 %v63, 1.0
  %v72 = vsel %vm64, %v48, %v68
  %v73 = vsel %vm65, %v49, %v69
  %v74 = vsel %vm66, %v50, %v70
  %v75 = vsel %vm67, %v51, %v71
  %v76 = vpack.c.bf16 %v72, %v72
  %v77 = vpack.c.bf16 %v73, %v73
  %v78 = vpack.c.bf16 %v74, %v74
  %v79 = vpack.c.bf16 %v75, %v75
  %v80 = vld [vmem:[%s3] sm:$0xf]
  %v81 = vld [vmem:[%s3 + $0x4] sm:$0xf]
  %v82 = vld [vmem:[%s3 + $0x8] sm:$0xf]
  %v83 = vld [vmem:[%s3 + $0xc] sm:$0xf]
  %v84 = vld [vmem:[%s3 + $0x10] sm:$0xf]
  %v85 = vld [vmem:[%s3 + $0x14] sm:$0xf]
  %v86 = vld [vmem:[%s3 + $0x18] sm:$0xf]
  %v87 = vld [vmem:[%s3 + $0x1c] sm:$0xf]
  %v88 = vld [vmem:[%s3 + $0x20] sm:$0xf]
  %v89 = vld [vmem:[%s3 + $0x24] sm:$0xf]
  %v90 = vld [vmem:[%s3 + $0x28] sm:$0xf]
  %v91 = vld [vmem:[%s3 + $0x2c] sm:$0xf]
  %v92 = vld [vmem:[%s3 + $0x30] sm:$0xf]
  %v93 = vld [vmem:[%s3 + $0x34] sm:$0xf]
  %v94 = vld [vmem:[%s3 + $0x38] sm:$0xf]
  %v95 = vld [vmem:[%s3 + $0x3c] sm:$0xf]
  %v96 = vld [vmem:[%s3 + $0x40] sm:$0xf]
  %v97 = vld [vmem:[%s3 + $0x44] sm:$0xf]
  %v98 = vld [vmem:[%s3 + $0x48] sm:$0xf]
  %v99 = vld [vmem:[%s3 + $0x4c] sm:$0xf]
  %v100 = vld [vmem:[%s3 + $0x50] sm:$0xf]
  %v101 = vld [vmem:[%s3 + $0x54] sm:$0xf]
  %v102 = vld [vmem:[%s3 + $0x58] sm:$0xf]
  %v103 = vld [vmem:[%s3 + $0x5c] sm:$0xf]
  %v104 = vld [vmem:[%s3 + $0x60] sm:$0xf]
  %v105 = vld [vmem:[%s3 + $0x64] sm:$0xf]
  %v106 = vld [vmem:[%s3 + $0x68] sm:$0xf]
  %v107 = vld [vmem:[%s3 + $0x6c] sm:$0xf]
  %v108 = vld [vmem:[%s3 + $0x70] sm:$0xf]
  %v109 = vld [vmem:[%s3 + $0x74] sm:$0xf]
  %v110 = vld [vmem:[%s3 + $0x78] sm:$0xf]
  %v111 = vld [vmem:[%s3 + $0x7c] sm:$0xf]
  %v112 = vld [vmem:[%s3 + $0x80] sm:$0xf]
  %v113 = vld [vmem:[%s3 + $0x84] sm:$0xf]
  %v114 = vld [vmem:[%s3 + $0x88] sm:$0xf]
  %v115 = vld [vmem:[%s3 + $0x8c] sm:$0xf]
  %v116 = vld [vmem:[%s3 + $0x90] sm:$0xf]
  %v117 = vld [vmem:[%s3 + $0x94] sm:$0xf]
  %v118 = vld [vmem:[%s3 + $0x98] sm:$0xf]
  %v119 = vld [vmem:[%s3 + $0x9c] sm:$0xf]
  %v120 = vld [vmem:[%s3 + $0xa0] sm:$0xf]
  %v121 = vld [vmem:[%s3 + $0xa4] sm:$0xf]
  %v122 = vld [vmem:[%s3 + $0xa8] sm:$0xf]
  %v123 = vld [vmem:[%s3 + $0xac] sm:$0xf]
  %v124 = vld [vmem:[%s3 + $0xb0] sm:$0xf]
  %v125 = vld [vmem:[%s3 + $0xb4] sm:$0xf]
  %v126 = vld [vmem:[%s3 + $0xb8] sm:$0xf]
  %v127 = vld [vmem:[%s3 + $0xbc] sm:$0xf]
  %v128 = vld [vmem:[%s3 + $0xc0] sm:$0xf]
  %v129 = vld [vmem:[%s3 + $0xc4] sm:$0xf]
  %v130 = vld [vmem:[%s3 + $0xc8] sm:$0xf]
  %v131 = vld [vmem:[%s3 + $0xcc] sm:$0xf]
  %v132 = vld [vmem:[%s3 + $0xd0] sm:$0xf]
  %v133 = vld [vmem:[%s3 + $0xd4] sm:$0xf]
  %v134 = vld [vmem:[%s3 + $0xd8] sm:$0xf]
  %v135 = vld [vmem:[%s3 + $0xdc] sm:$0xf]
  %v136 = vld [vmem:[%s3 + $0xe0] sm:$0xf]
  %v137 = vld [vmem:[%s3 + $0xe4] sm:$0xf]
  %v138 = vld [vmem:[%s3 + $0xe8] sm:$0xf]
  %v139 = vld [vmem:[%s3 + $0xec] sm:$0xf]
  %v140 = vld [vmem:[%s3 + $0xf0] sm:$0xf]
  %v141 = vld [vmem:[%s3 + $0xf4] sm:$0xf]
  %v142 = vld [vmem:[%s3 + $0xf8] sm:$0xf]
  %v143 = vld [vmem:[%s3 + $0xfc] sm:$0xf]
  %v144 = vld [vmem:[%s4] sm:$0x1]
  %v146 = vperm.slane %v144, 0
  %v212 = vunpack.c.l.b16 %v80
  %v213 = vunpack.c.l.b16 %v81
  %v214 = vunpack.c.l.b16 %v82
  %v215 = vunpack.c.l.b16 %v83
  %v216 = vunpack.c.l.b16 %v84
  %v217 = vunpack.c.l.b16 %v85
  %v218 = vunpack.c.l.b16 %v86
  %v219 = vunpack.c.l.b16 %v87
  %v220 = vunpack.c.l.b16 %v88
  %v221 = vunpack.c.l.b16 %v89
  %v222 = vunpack.c.l.b16 %v90
  %v223 = vunpack.c.l.b16 %v91
  %v224 = vunpack.c.l.b16 %v92
  %v225 = vunpack.c.l.b16 %v93
  %v226 = vunpack.c.l.b16 %v94
  %v227 = vunpack.c.l.b16 %v95
  %v228 = vunpack.c.l.b16 %v96
  %v229 = vunpack.c.l.b16 %v97
  %v230 = vunpack.c.l.b16 %v98
  %v231 = vunpack.c.l.b16 %v99
  %v232 = vunpack.c.l.b16 %v100
  %v233 = vunpack.c.l.b16 %v101
  %v234 = vunpack.c.l.b16 %v102
  %v235 = vunpack.c.l.b16 %v103
  %v236 = vunpack.c.l.b16 %v104
  %v237 = vunpack.c.l.b16 %v105
  %v238 = vunpack.c.l.b16 %v106
  %v239 = vunpack.c.l.b16 %v107
  %v240 = vunpack.c.l.b16 %v108
  %v241 = vunpack.c.l.b16 %v109
  %v242 = vunpack.c.l.b16 %v110
  %v243 = vunpack.c.l.b16 %v111
  %v244 = vunpack.c.l.b16 %v112
  %v245 = vunpack.c.l.b16 %v113
  %v246 = vunpack.c.l.b16 %v114
  %v247 = vunpack.c.l.b16 %v115
  %v248 = vunpack.c.l.b16 %v116
  %v249 = vunpack.c.l.b16 %v117
  %v250 = vunpack.c.l.b16 %v118
  %v251 = vunpack.c.l.b16 %v119
  %v252 = vunpack.c.l.b16 %v120
  %v253 = vunpack.c.l.b16 %v121
  %v254 = vunpack.c.l.b16 %v122
  %v255 = vunpack.c.l.b16 %v123
  %v256 = vunpack.c.l.b16 %v124
  %v257 = vunpack.c.l.b16 %v125
  %v258 = vunpack.c.l.b16 %v126
  %v259 = vunpack.c.l.b16 %v127
  %v260 = vunpack.c.l.b16 %v128
  %v261 = vunpack.c.l.b16 %v129
  %v262 = vunpack.c.l.b16 %v130
  %v263 = vunpack.c.l.b16 %v131
  %v264 = vunpack.c.l.b16 %v132
  %v265 = vunpack.c.l.b16 %v133
  %v266 = vunpack.c.l.b16 %v134
  %v267 = vunpack.c.l.b16 %v135
  %v268 = vunpack.c.l.b16 %v136
  %v269 = vunpack.c.l.b16 %v137
  %v270 = vunpack.c.l.b16 %v138
  %v271 = vunpack.c.l.b16 %v139
  %v272 = vunpack.c.l.b16 %v140
  %v273 = vunpack.c.l.b16 %v141
  %v274 = vunpack.c.l.b16 %v142
  %v275 = vunpack.c.l.b16 %v143
  %v276 = vpack.c.b16 %v213, %v212
  %v277 = vpack.c.b16 %v215, %v214
  %v278 = vpack.c.b16 %v217, %v216
  %v279 = vpack.c.b16 %v219, %v218
  %v280 = vpack.c.b16 %v221, %v220
  %v281 = vpack.c.b16 %v223, %v222
  %v282 = vpack.c.b16 %v225, %v224
  %v283 = vpack.c.b16 %v227, %v226
  %v284 = vpack.c.b16 %v229, %v228
  %v285 = vpack.c.b16 %v231, %v230
  %v286 = vpack.c.b16 %v233, %v232
  %v287 = vpack.c.b16 %v235, %v234
  %v288 = vpack.c.b16 %v237, %v236
  %v289 = vpack.c.b16 %v239, %v238
  %v290 = vpack.c.b16 %v241, %v240
  %v291 = vpack.c.b16 %v243, %v242
  %v292 = vpack.c.b16 %v245, %v244
  %v293 = vpack.c.b16 %v247, %v246
  %v294 = vpack.c.b16 %v249, %v248
  %v295 = vpack.c.b16 %v251, %v250
  %v296 = vpack.c.b16 %v253, %v252
  %v297 = vpack.c.b16 %v255, %v254
  %v298 = vpack.c.b16 %v257, %v256
  %v299 = vpack.c.b16 %v259, %v258
  %v300 = vpack.c.b16 %v261, %v260
  %v301 = vpack.c.b16 %v263, %v262
  %v302 = vpack.c.b16 %v265, %v264
  %v303 = vpack.c.b16 %v267, %v266
  %v304 = vpack.c.b16 %v269, %v268
  %v305 = vpack.c.b16 %v271, %v270
  %v306 = vpack.c.b16 %v273, %v272
  %v307 = vpack.c.b16 %v275, %v274
  %340 = vmatpush.bf16.msra.mxu0 %v283
  %341 = vmatpush.bf16.msra.mxu0 %v282
  %342 = vmatpush.bf16.msra.mxu0 %v281
  %343 = vmatpush.bf16.msra.mxu0 %v280
  %344 = vmatpush.bf16.msra.mxu0 %v279
  %345 = vmatpush.bf16.msra.mxu0 %v278
  %346 = vmatpush.bf16.msra.mxu0 %v277
  %347 = vmatpush.bf16.msra.mxu0 %v276
  %348 = vmatmul.bf16.gmra.mxu0 %v76
  %v349 = vpop.f32.mrf.mxu0
  %v350 = vadd.f32 %v146, %v349
  %v351 = vpop.f32.mrf.mxu0
  %352 = vdwg.mxu0
  %353 = vmatpush.bf16.msra.mxu0 %v291
  %354 = vmatpush.bf16.msra.mxu0 %v290
  %355 = vmatpush.bf16.msra.mxu0 %v289
  %356 = vmatpush.bf16.msra.mxu0 %v288
  %357 = vmatpush.bf16.msra.mxu0 %v287
  %358 = vmatpush.bf16.msra.mxu0 %v286
  %359 = vmatpush.bf16.msra.mxu0 %v285
  %360 = vmatpush.bf16.msra.mxu0 %v284
  %361 = vmatmul.bf16.gmra.mxu0 %v77
  %v362 = vpop.f32.mrf.mxu0
  %v363 = vadd.f32 %v350, %v362
  %v364 = vpop.f32.mrf.mxu0
  %365 = vdwg.mxu0
  %366 = vmatpush.bf16.msra.mxu0 %v299
  %367 = vmatpush.bf16.msra.mxu0 %v298
  %368 = vmatpush.bf16.msra.mxu0 %v297
  %369 = vmatpush.bf16.msra.mxu0 %v296
  %370 = vmatpush.bf16.msra.mxu0 %v295
  %371 = vmatpush.bf16.msra.mxu0 %v294
  %372 = vmatpush.bf16.msra.mxu0 %v293
  %373 = vmatpush.bf16.msra.mxu0 %v292
  %374 = vmatmul.bf16.gmra.mxu0 %v78
  %v375 = vpop.f32.mrf.mxu0
  %v376 = vadd.f32 %v363, %v375
  %v377 = vpop.f32.mrf.mxu0
  %378 = vdwg.mxu0
  %379 = vmatpush.bf16.msra.mxu0 %v307
  %380 = vmatpush.bf16.msra.mxu0 %v306
  %381 = vmatpush.bf16.msra.mxu0 %v305
  %382 = vmatpush.bf16.msra.mxu0 %v304
  %383 = vmatpush.bf16.msra.mxu0 %v303
  %384 = vmatpush.bf16.msra.mxu0 %v302
  %385 = vmatpush.bf16.msra.mxu0 %v301
  %386 = vmatpush.bf16.msra.mxu0 %v300
  %387 = vmatmul.bf16.gmra.mxu0 %v79
  %v388 = vpop.f32.mrf.mxu0
  %v389 = vadd.f32 %v376, %v388
  %v390 = vpop.f32.mrf.mxu0
  %391 = vdwg.mxu0
  %392 = vst [vmem:[%s5] sm:$0xff] %v389
  // Predicated region
  $region22: #{encoder_forward.5} parent=0 // pred_check
    _
  $region23: #{encoder_forward.5} parent=0 // pred_check_branch
    %394 = sbr.rel (0) target = $region25
  $region24: #{encoder_forward.5} parent=0 // pred_region
    _
  $region25: #{encoder_forward.5} parent=0 // pred_fallthru
    _
  // Predicated region
  $region26: #{encoder_forward.5} parent=0 // pred_check
    _
  $region27: #{encoder_forward.5} parent=0 // pred_check_branch
    %396 = sbr.rel (0) target = $region29
  $region28: #{encoder_forward.5} parent=0 // pred_region
    _
  $region29: #{encoder_forward.5} parent=0 // pred_fallthru
    _

// kernel: encoder_forward.4
$region0: #{encoder_forward.4}
  #allocation0 [shape = 'u32[]', space=smem, size = 0x4, offset = 0x4, fixed_abs, tag = 'smem constant byte address 0x4 - core index']
  #allocation1 [shape = 'u32[72,128]{1,0:T(1,128)}', space=vmem, size = 0x9000, scoped, tag = 'internal scratch']
  %s0 = inlined_call_operand.vmem [shape: f32[8,512], index: 0, kind: input, shape index: {}]
  %s1 = inlined_call_operand.vmem [shape: f32[1,512], index: 1, kind: input, shape index: {}]
  %s2 = inlined_call_operand.vmem [shape: f32[1,512], index: 2, kind: input, shape index: {}]
  %s3 = inlined_call_operand.hbm [shape: bf16[512,512], index: 3, kind: input, shape index: {}]
  %s4 = inlined_call_operand.vmem [shape: f32[8,512], index: 4, kind: output, shape index: {0}]
  %s5 = inlined_call_operand.vmem [shape: f32[1,2,512], index: 5, kind: output, shape index: {1}]
  %6 = xla_tuple %s4, %s5
  %s7 = sld [smem:[#allocation0]]
  $region38: #{encoder_forward.4} parent=0
    _
  %s9 = ssub.s32 1, %s7
  %s10 = scalar_select 0, %s9, %s7
  $region1: #{encoder_forward.4} parent=0
    #allocation2 [shape = 'u8[524288]{0}', space=vmem, size = 0x80000, scoped, tag = 'input window, operand 3, single buffered']
    #allocation3 [shape = 's32[1]{0}', space=sflag, size = 0x4, scoped, tag = 'scoped memory for encoder_forward.4']
    %11 = vsyncpa [#allocation3], 0
    // Predicated region
    $region2: #{encoder_forward.4} parent=1 // pred_check
      _
    $region3: #{encoder_forward.4} parent=1 // pred_check_branch
      %13 = sbr.rel (0) target = $region5
    $region4: #{encoder_forward.4} parent=1 // pred_region
      _
    $region5: #{encoder_forward.4} parent=1 // pred_fallthru
      _
    // Predicated region
    $region6: #{encoder_forward.4} parent=1 // pred_check
      _
    $region7: #{encoder_forward.4} parent=1 // pred_check_branch
      %15 = sbr.rel (0) target = $region9
    $region8: #{encoder_forward.4} parent=1 // pred_region
      _
    $region9: #{encoder_forward.4} parent=1 // pred_fallthru
      _
    // Predicated region
    $region10: #{encoder_forward.4} parent=1 // pred_check
      _
    $region11: #{encoder_forward.4} parent=1 // pred_check_branch
      %17 = sbr.rel (0) target = $region13
    $region12: #{encoder_forward.4} parent=1 // pred_region
      _
    $region13: #{encoder_forward.4} parent=1 // pred_fallthru
      _
    // Predicated region
    $region14: #{encoder_forward.4} parent=1 // pred_check
      _
    $region15: #{encoder_forward.4} parent=1 // pred_check_branch
      %19 = sbr.rel (0) target = $region17
    $region16: #{encoder_forward.4} parent=1 // pred_region
      %21 = vsyncadd [#allocation3], 0
      %s22 = sshll.u32 %s3, 4
      %s23 = int_to_ptr.hbm [resolvable:$true] %s22
      %s24 = sshll.u32 [#allocation2], 4
      %s25 = int_to_ptr.vmem [resolvable:$true] %s24
      %30 = dma.hbm_to_vmem [thread:$0]  %s23, 16384, %s25, [#allocation3], 256, 256, 16
    $region17: #{encoder_forward.4} parent=1 // pred_fallthru
      _
    // Predicated region
    $region18: #{encoder_forward.4} parent=1 // pred_check
      _
    $region19: #{encoder_forward.4} parent=1 // pred_check_branch
      %32 = sbr.rel (0) target = $region21
    $region20: #{encoder_forward.4} parent=1 // pred_region
      %34 = dma.done [#allocation3], 16384
    $region21: #{encoder_forward.4} parent=1 // pred_fallthru
      _
    %v35 = vld [vmem:[%s0] sm:$0xff]
    %v36 = vld [vmem:[%s0 + $0x8] sm:$0xff]
    %v37 = vld [vmem:[%s0 + $0x10] sm:$0xff]
    %v38 = vld [vmem:[%s0 + $0x18] sm:$0xff]
    %v39 = vld [vmem:[%s1] sm:$0xf]
    %v41 = vperm.slane %v39, 0
    %v42 = vperm.slane %v39, 1
    %v43 = vperm.slane %v39, 2
    %v44 = vperm.slane %v39, 3
    %v49 = vmul.f32 %v35, %v41
    %v50 = vmul.f32 %v36, %v42
    %v51 = vmul.f32 %v37, %v43
    %v52 = vmul.f32 %v38, %v44
    %v53 = vld [vmem:[%s2] sm:$0xf]
    %v55 = vperm.slane %v53, 0
    %v56 = vperm.slane %v53, 1
    %v57 = vperm.slane %v53, 2
    %v58 = vperm.slane %v53, 3
    %v63 = vadd.f32 %v49, %v55
    %v64 = vadd.f32 %v50, %v56
    %v65 = vadd.f32 %v51, %v57
    %v66 = vadd.f32 %v52, %v58
    %v67 = vmin.f32 %v63, 0.0
    %v68 = vmin.f32 %v64, 0.0
    %v69 = vmin.f32 %v65, 0.0
    %v70 = vmin.f32 %v66, 0.0
    %v71 = vmul.f32 %v67, 1.442695
    %v72 = vpow.pop %v71
    %v73 = vmul.f32 %v68, 1.442695
    %v74 = vpow.pop %v73
    %v75 = vmul.f32 %v69, 1.442695
    %v76 = vpow.pop %v75
    %v77 = vmul.f32 %v70, 1.442695
    %v78 = vpow.pop %v77
    %vm79 = vcmp.gt.f32.partialorder %v63, 0.0
    %vm80 = vcmp.gt.f32.partialorder %v64, 0.0
    %vm81 = vcmp.gt.f32.partialorder %v65, 0.0
    %vm82 = vcmp.gt.f32.partialorder %v66, 0.0
    %v83 = vsub.f32 %v72, 1.0
    %v84 = vsub.f32 %v74, 1.0
    %v85 = vsub.f32 %v76, 1.0
    %v86 = vsub.f32 %v78, 1.0
    %v87 = vsel %vm79, %v63, %v83
    %v88 = vsel %vm80, %v64, %v84
    %v89 = vsel %vm81, %v65, %v85
    %v90 = vsel %vm82, %v66, %v86
    %v91 = vpack.c.bf16 %v87, %v87
    %v92 = vpack.c.bf16 %v88, %v88
    %v93 = vpack.c.bf16 %v89, %v89
    %v94 = vpack.c.bf16 %v90, %v90
    %v95 = vld [vmem:[#allocation2] sm:$0xff]
    %v96 = vld [vmem:[#allocation2 + $0x8] sm:$0xff]
    %v97 = vld [vmem:[#allocation2 + $0x10] sm:$0xff]
    %v98 = vld [vmem:[#allocation2 + $0x18] sm:$0xff]
    %v99 = vld [vmem:[#allocation2 + $0x20] sm:$0xff]
    %v100 = vld [vmem:[#allocation2 + $0x28] sm:$0xff]
    %v101 = vld [vmem:[#allocation2 + $0x30] sm:$0xff]
    %v102 = vld [vmem:[#allocation2 + $0x38] sm:$0xff]
    %v103 = vld [vmem:[#allocation2 + $0x40] sm:$0xff]
    %v104 = vld [vmem:[#allocation2 + $0x48] sm:$0xff]
    %v105 = vld [vmem:[#allocation2 + $0x50] sm:$0xff]
    %v106 = vld [vmem:[#allocation2 + $0x58] sm:$0xff]
    %v107 = vld [vmem:[#allocation2 + $0x60] sm:$0xff]
    %v108 = vld [vmem:[#allocation2 + $0x68] sm:$0xff]
    %v109 = vld [vmem:[#allocation2 + $0x70] sm:$0xff]
    %v110 = vld [vmem:[#allocation2 + $0x78] sm:$0xff]
    %v111 = vld [vmem:[#allocation2 + $0x80] sm:$0xff]
    %v112 = vld [vmem:[#allocation2 + $0x88] sm:$0xff]
    %v113 = vld [vmem:[#allocation2 + $0x90] sm:$0xff]
    %v114 = vld [vmem:[#allocation2 + $0x98] sm:$0xff]
    %v115 = vld [vmem:[#allocation2 + $0xa0] sm:$0xff]
    %v116 = vld [vmem:[#allocation2 + $0xa8] sm:$0xff]
    %v117 = vld [vmem:[#allocation2 + $0xb0] sm:$0xff]
    %v118 = vld [vmem:[#allocation2 + $0xb8] sm:$0xff]
    %v119 = vld [vmem:[#allocation2 + $0xc0] sm:$0xff]
    %v120 = vld [vmem:[#allocation2 + $0xc8] sm:$0xff]
    %v121 = vld [vmem:[#allocation2 + $0xd0] sm:$0xff]
    %v122 = vld [vmem:[#allocation2 + $0xd8] sm:$0xff]
    %v123 = vld [vmem:[#allocation2 + $0xe0] sm:$0xff]
    %v124 = vld [vmem:[#allocation2 + $0xe8] sm:$0xff]
    %v125 = vld [vmem:[#allocation2 + $0xf0] sm:$0xff]
    %v126 = vld [vmem:[#allocation2 + $0xf8] sm:$0xff]
    %v127 = vld [vmem:[#allocation2 + $0x100] sm:$0xff]
    %v128 = vld [vmem:[#allocation2 + $0x108] sm:$0xff]
    %v129 = vld [vmem:[#allocation2 + $0x110] sm:$0xff]
    %v130 = vld [vmem:[#allocation2 + $0x118] sm:$0xff]
    %v131 = vld [vmem:[#allocation2 + $0x120] sm:$0xff]
    %v132 = vld [vmem:[#allocation2 + $0x128] sm:$0xff]
    %v133 = vld [vmem:[#allocation2 + $0x130] sm:$0xff]
    %v134 = vld [vmem:[#allocation2 + $0x138] sm:$0xff]
    %v135 = vld [vmem:[#allocation2 + $0x140] sm:$0xff]
    %v136 = vld [vmem:[#allocation2 + $0x148] sm:$0xff]
    %v137 = vld [vmem:[#allocation2 + $0x150] sm:$0xff]
    %v138 = vld [vmem:[#allocation2 + $0x158] sm:$0xff]
    %v139 = vld [vmem:[#allocation2 + $0x160] sm:$0xff]
    %v140 = vld [vmem:[#allocation2 + $0x168] sm:$0xff]
    %v141 = vld [vmem:[#allocation2 + $0x170] sm:$0xff]
    %v142 = vld [vmem:[#allocation2 + $0x178] sm:$0xff]
    %v143 = vld [vmem:[#allocation2 + $0x180] sm:$0xff]
    %v144 = vld [vmem:[#allocation2 + $0x188] sm:$0xff]
    %v145 = vld [vmem:[#allocation2 + $0x190] sm:$0xff]
    %v146 = vld [vmem:[#allocation2 + $0x198] sm:$0xff]
    %v147 = vld [vmem:[#allocation2 + $0x1a0] sm:$0xff]
    %v148 = vld [vmem:[#allocation2 + $0x1a8] sm:$0xff]
    %v149 = vld [vmem:[#allocation2 + $0x1b0] sm:$0xff]
    %v150 = vld [vmem:[#allocation2 + $0x1b8] sm:$0xff]
    %v151 = vld [vmem:[#allocation2 + $0x1c0] sm:$0xff]
    %v152 = vld [vmem:[#allocation2 + $0x1c8] sm:$0xff]
    %v153 = vld [vmem:[#allocation2 + $0x1d0] sm:$0xff]
    %v154 = vld [vmem:[#allocation2 + $0x1d8] sm:$0xff]
    %v155 = vld [vmem:[#allocation2 + $0x1e0] sm:$0xff]
    %v156 = vld [vmem:[#allocation2 + $0x1e8] sm:$0xff]
    %v157 = vld [vmem:[#allocation2 + $0x1f0] sm:$0xff]
    %v158 = vld [vmem:[#allocation2 + $0x1f8] sm:$0xff]
    %v159 = vld [vmem:[#allocation2 + $0x200] sm:$0xff]
    %v160 = vld [vmem:[#allocation2 + $0x208] sm:$0xff]
    %v161 = vld [vmem:[#allocation2 + $0x210] sm:$0xff]
    %v162 = vld [vmem:[#allocation2 + $0x218] sm:$0xff]
    %v163 = vld [vmem:[#allocation2 + $0x220] sm:$0xff]
    %v164 = vld [vmem:[#allocation2 + $0x228] sm:$0xff]
    %v165 = vld [vmem:[#allocation2 + $0x230] sm:$0xff]
    %v166 = vld [vmem:[#allocation2 + $0x238] sm:$0xff]
    %v167 = vld [vmem:[#allocation2 + $0x240] sm:$0xff]
    %v168 = vld [vmem:[#allocation2 + $0x248] sm:$0xff]
    %v169 = vld [vmem:[#allocation2 + $0x250] sm:$0xff]
    %v170 = vld [vmem:[#allocation2 + $0x258] sm:$0xff]
    %v171 = vld [vmem:[#allocation2 + $0x260] sm:$0xff]
    %v172 = vld [vmem:[#allocation2 + $0x268] sm:$0xff]
    %v173 = vld [vmem:[#allocation2 + $0x270] sm:$0xff]
    %v174 = vld [vmem:[#allocation2 + $0x278] sm:$0xff]
    %v175 = vld [vmem:[#allocation2 + $0x280] sm:$0xff]
    %v176 = vld [vmem:[#allocation2 + $0x288] sm:$0xff]
    %v177 = vld [vmem:[#allocation2 + $0x290] sm:$0xff]
    %v178 = vld [vmem:[#allocation2 + $0x298] sm:$0xff]
    %v179 = vld [vmem:[#allocation2 + $0x2a0] sm:$0xff]
    %v180 = vld [vmem:[#allocation2 + $0x2a8] sm:$0xff]
    %v181 = vld [vmem:[#allocation2 + $0x2b0] sm:$0xff]
    %v182 = vld [vmem:[#allocation2 + $0x2b8] sm:$0xff]
    %v183 = vld [vmem:[#allocation2 + $0x2c0] sm:$0xff]
    %v184 = vld [vmem:[#allocation2 + $0x2c8] sm:$0xff]
    %v185 = vld [vmem:[#allocation2 + $0x2d0] sm:$0xff]
    %v186 = vld [vmem:[#allocation2 + $0x2d8] sm:$0xff]
    %v187 = vld [vmem:[#allocation2 + $0x2e0] sm:$0xff]
    %v188 = vld [vmem:[#allocation2 + $0x2e8] sm:$0xff]
    %v189 = vld [vmem:[#allocation2 + $0x2f0] sm:$0xff]
    %v190 = vld [vmem:[#allocation2 + $0x2f8] sm:$0xff]
    %v191 = vld [vmem:[#allocation2 + $0x300] sm:$0xff]
    %v192 = vld [vmem:[#allocation2 + $0x308] sm:$0xff]
    %v193 = vld [vmem:[#allocation2 + $0x310] sm:$0xff]
    %v194 = vld [vmem:[#allocation2 + $0x318] sm:$0xff]
    %v195 = vld [vmem:[#allocation2 + $0x320] sm:$0xff]
    %v196 = vld [vmem:[#allocation2 + $0x328] sm:$0xff]
    %v197 = vld [vmem:[#allocation2 + $0x330] sm:$0xff]
    %v198 = vld [vmem:[#allocation2 + $0x338] sm:$0xff]
    %v199 = vld [vmem:[#allocation2 + $0x340] sm:$0xff]
    %v200 = vld [vmem:[#allocation2 + $0x348] sm:$0xff]
    %v201 = vld [vmem:[#allocation2 + $0x350] sm:$0xff]
    %v202 = vld [vmem:[#allocation2 + $0x358] sm:$0xff]
    %v203 = vld [vmem:[#allocation2 + $0x360] sm:$0xff]
    %v204 = vld [vmem:[#allocation2 + $0x368] sm:$0xff]
    %v205 = vld [vmem:[#allocation2 + $0x370] sm:$0xff]
    %v206 = vld [vmem:[#allocation2 + $0x378] sm:$0xff]
    %v207 = vld [vmem:[#allocation2 + $0x380] sm:$0xff]
    %v208 = vld [vmem:[#allocation2 + $0x388] sm:$0xff]
    %v209 = vld [vmem:[#allocation2 + $0x390] sm:$0xff]
    %v210 = vld [vmem:[#allocation2 + $0x398] sm:$0xff]
    %v211 = vld [vmem:[#allocation2 + $0x3a0] sm:$0xff]
    %v212 = vld [vmem:[#allocation2 + $0x3a8] sm:$0xff]
    %v213 = vld [vmem:[#allocation2 + $0x3b0] sm:$0xff]
    %v214 = vld [vmem:[#allocation2 + $0x3b8] sm:$0xff]
    %v215 = vld [vmem:[#allocation2 + $0x3c0] sm:$0xff]
    %v216 = vld [vmem:[#allocation2 + $0x3c8] sm:$0xff]
    %v217 = vld [vmem:[#allocation2 + $0x3d0] sm:$0xff]
    %v218 = vld [vmem:[#allocation2 + $0x3d8] sm:$0xff]
    %v219 = vld [vmem:[#allocation2 + $0x3e0] sm:$0xff]
    %v220 = vld [vmem:[#allocation2 + $0x3e8] sm:$0xff]
    %v221 = vld [vmem:[#allocation2 + $0x3f0] sm:$0xff]
    %v222 = vld [vmem:[#allocation2 + $0x3f8] sm:$0xff]
    %v351 = vunpack.c.l.b16 %v95
    %v352 = vunpack.c.h.b16 %v95
    %v353 = vunpack.c.l.b16 %v96
    %v354 = vunpack.c.h.b16 %v96
    %v355 = vunpack.c.l.b16 %v97
    %v356 = vunpack.c.h.b16 %v97
    %v357 = vunpack.c.l.b16 %v98
    %v358 = vunpack.c.h.b16 %v98
    %v359 = vunpack.c.l.b16 %v99
    %v360 = vunpack.c.h.b16 %v99
    %v361 = vunpack.c.l.b16 %v100
    %v362 = vunpack.c.h.b16 %v100
    %v363 = vunpack.c.l.b16 %v101
    %v364 = vunpack.c.h.b16 %v101
    %v365 = vunpack.c.l.b16 %v102
    %v366 = vunpack.c.h.b16 %v102
    %v367 = vunpack.c.l.b16 %v103
    %v368 = vunpack.c.h.b16 %v103
    %v369 = vunpack.c.l.b16 %v104
    %v370 = vunpack.c.h.b16 %v104
    %v371 = vunpack.c.l.b16 %v105
    %v372 = vunpack.c.h.b16 %v105
    %v373 = vunpack.c.l.b16 %v106
    %v374 = vunpack.c.h.b16 %v106
    %v375 = vunpack.c.l.b16 %v107
    %v376 = vunpack.c.h.b16 %v107
    %v377 = vunpack.c.l.b16 %v108
    %v378 = vunpack.c.h.b16 %v108
    %v379 = vunpack.c.l.b16 %v109
    %v380 = vunpack.c.h.b16 %v109
    %v381 = vunpack.c.l.b16 %v110
    %v382 = vunpack.c.h.b16 %v110
    %v383 = vunpack.c.l.b16 %v111
    %v384 = vunpack.c.h.b16 %v111
    %v385 = vunpack.c.l.b16 %v112
    %v386 = vunpack.c.h.b16 %v112
    %v387 = vunpack.c.l.b16 %v113
    %v388 = vunpack.c.h.b16 %v113
    %v389 = vunpack.c.l.b16 %v114
    %v390 = vunpack.c.h.b16 %v114
    %v391 = vunpack.c.l.b16 %v115
    %v392 = vunpack.c.h.b16 %v115
    %v393 = vunpack.c.l.b16 %v116
    %v394 = vunpack.c.h.b16 %v116
    %v395 = vunpack.c.l.b16 %v117
    %v396 = vunpack.c.h.b16 %v117
    %v397 = vunpack.c.l.b16 %v118
    %v398 = vunpack.c.h.b16 %v118
    %v399 = vunpack.c.l.b16 %v119
    %v400 = vunpack.c.h.b16 %v119
    %v401 = vunpack.c.l.b16 %v120
    %v402 = vunpack.c.h.b16 %v120
    %v403 = vunpack.c.l.b16 %v121
    %v404 = vunpack.c.h.b16 %v121
    %v405 = vunpack.c.l.b16 %v122
    %v406 = vunpack.c.h.b16 %v122
    %v407 = vunpack.c.l.b16 %v123
    %v408 = vunpack.c.h.b16 %v123
    %v409 = vunpack.c.l.b16 %v124
    %v410 = vunpack.c.h.b16 %v124
    %v411 = vunpack.c.l.b16 %v125
    %v412 = vunpack.c.h.b16 %v125
    %v413 = vunpack.c.l.b16 %v126
    %v414 = vunpack.c.h.b16 %v126
    %v415 = vunpack.c.l.b16 %v127
    %v416 = vunpack.c.h.b16 %v127
    %v417 = vunpack.c.l.b16 %v128
    %v418 = vunpack.c.h.b16 %v128
    %v419 = vunpack.c.l.b16 %v129
    %v420 = vunpack.c.h.b16 %v129
    %v421 = vunpack.c.l.b16 %v130
    %v422 = vunpack.c.h.b16 %v130
    %v423 = vunpack.c.l.b16 %v131
    %v424 = vunpack.c.h.b16 %v131
    %v425 = vunpack.c.l.b16 %v132
    %v426 = vunpack.c.h.b16 %v132
    %v427 = vunpack.c.l.b16 %v133
    %v428 = vunpack.c.h.b16 %v133
    %v429 = vunpack.c.l.b16 %v134
    %v430 = vunpack.c.h.b16 %v134
    %v431 = vunpack.c.l.b16 %v135
    %v432 = vunpack.c.h.b16 %v135
    %v433 = vunpack.c.l.b16 %v136
    %v434 = vunpack.c.h.b16 %v136
    %v435 = vunpack.c.l.b16 %v137
    %v436 = vunpack.c.h.b16 %v137
    %v437 = vunpack.c.l.b16 %v138
    %v438 = vunpack.c.h.b16 %v138
    %v439 = vunpack.c.l.b16 %v139
    %v440 = vunpack.c.h.b16 %v139
    %v441 = vunpack.c.l.b16 %v140
    %v442 = vunpack.c.h.b16 %v140
    %v443 = vunpack.c.l.b16 %v141
    %v444 = vunpack.c.h.b16 %v141
    %v445 = vunpack.c.l.b16 %v142
    %v446 = vunpack.c.h.b16 %v142
    %v447 = vunpack.c.l.b16 %v143
    %v448 = vunpack.c.h.b16 %v143
    %v449 = vunpack.c.l.b16 %v144
    %v450 = vunpack.c.h.b16 %v144
    %v451 = vunpack.c.l.b16 %v145
    %v452 = vunpack.c.h.b16 %v145
    %v453 = vunpack.c.l.b16 %v146
    %v454 = vunpack.c.h.b16 %v146
    %v455 = vunpack.c.l.b16 %v147
    %v456 = vunpack.c.h.b16 %v147
    %v457 = vunpack.c.l.b16 %v148
    %v458 = vunpack.c.h.b16 %v148
    %v459 = vunpack.c.l.b16 %v149
    %v460 = vunpack.c.h.b16 %v149
    %v461 = vunpack.c.l.b16 %v150
    %v462 = vunpack.c.h.b16 %v150
    %v463 = vunpack.c.l.b16 %v151
    %v464 = vunpack.c.h.b16 %v151
    %v465 = vunpack.c.l.b16 %v152
    %v466 = vunpack.c.h.b16 %v152
    %v467 = vunpack.c.l.b16 %v153
    %v468 = vunpack.c.h.b16 %v153
    %v469 = vunpack.c.l.b16 %v154
    %v470 = vunpack.c.h.b16 %v154
    %v471 = vunpack.c.l.b16 %v155
    %v472 = vunpack.c.h.b16 %v155
    %v473 = vunpack.c.l.b16 %v156
    %v474 = vunpack.c.h.b16 %v156
    %v475 = vunpack.c.l.b16 %v157
    %v476 = vunpack.c.h.b16 %v157
    %v477 = vunpack.c.l.b16 %v158
    %v478 = vunpack.c.h.b16 %v158
    %v479 = vunpack.c.l.b16 %v159
    %v480 = vunpack.c.h.b16 %v159
    %v481 = vunpack.c.l.b16 %v160
    %v482 = vunpack.c.h.b16 %v160
    %v483 = vunpack.c.l.b16 %v161
    %v484 = vunpack.c.h.b16 %v161
    %v485 = vunpack.c.l.b16 %v162
    %v486 = vunpack.c.h.b16 %v162
    %v487 = vunpack.c.l.b16 %v163
    %v488 = vunpack.c.h.b16 %v163
    %v489 = vunpack.c.l.b16 %v164
    %v490 = vunpack.c.h.b16 %v164
    %v491 = vunpack.c.l.b16 %v165
    %v492 = vunpack.c.h.b16 %v165
    %v493 = vunpack.c.l.b16 %v166
    %v494 = vunpack.c.h.b16 %v166
    %v495 = vunpack.c.l.b16 %v167
    %v496 = vunpack.c.h.b16 %v167
    %v497 = vunpack.c.l.b16 %v168
    %v498 = vunpack.c.h.b16 %v168
    %v499 = vunpack.c.l.b16 %v169
    %v500 = vunpack.c.h.b16 %v169
    %v501 = vunpack.c.l.b16 %v170
    %v502 = vunpack.c.h.b16 %v170
    %v503 = vunpack.c.l.b16 %v171
    %v504 = vunpack.c.h.b16 %v171
    %v505 = vunpack.c.l.b16 %v172
    %v506 = vunpack.c.h.b16 %v172
    %v507 = vunpack.c.l.b16 %v173
    %v508 = vunpack.c.h.b16 %v173
    %v509 = vunpack.c.l.b16 %v174
    %v510 = vunpack.c.h.b16 %v174
    %v511 = vunpack.c.l.b16 %v175
    %v512 = vunpack.c.h.b16 %v175
    %v513 = vunpack.c.l.b16 %v176
    %v514 = vunpack.c.h.b16 %v176
    %v515 = vunpack.c.l.b16 %v177
    %v516 = vunpack.c.h.b16 %v177
    %v517 = vunpack.c.l.b16 %v178
    %v518 = vunpack.c.h.b16 %v178
    %v519 = vunpack.c.l.b16 %v179
    %v520 = vunpack.c.h.b16 %v179
    %v521 = vunpack.c.l.b16 %v180
    %v522 = vunpack.c.h.b16 %v180
    %v523 = vunpack.c.l.b16 %v181
    %v524 = vunpack.c.h.b16 %v181
    %v525 = vunpack.c.l.b16 %v182
    %v526 = vunpack.c.h.b16 %v182
    %v527 = vunpack.c.l.b16 %v183
    %v528 = vunpack.c.h.b16 %v183
    %v529 = vunpack.c.l.b16 %v184
    %v530 = vunpack.c.h.b16 %v184
    %v531 = vunpack.c.l.b16 %v185
    %v532 = vunpack.c.h.b16 %v185
    %v533 = vunpack.c.l.b16 %v186
    %v534 = vunpack.c.h.b16 %v186
    %v535 = vunpack.c.l.b16 %v187
    %v536 = vunpack.c.h.b16 %v187
    %v537 = vunpack.c.l.b16 %v188
    %v538 = vunpack.c.h.b16 %v188
    %v539 = vunpack.c.l.b16 %v189
    %v540 = vunpack.c.h.b16 %v189
    %v541 = vunpack.c.l.b16 %v190
    %v542 = vunpack.c.h.b16 %v190
    %v543 = vunpack.c.l.b16 %v191
    %v544 = vunpack.c.h.b16 %v191
    %v545 = vunpack.c.l.b16 %v192
    %v546 = vunpack.c.h.b16 %v192
    %v547 = vunpack.c.l.b16 %v193
    %v548 = vunpack.c.h.b16 %v193
    %v549 = vunpack.c.l.b16 %v194
    %v550 = vunpack.c.h.b16 %v194
    %v551 = vunpack.c.l.b16 %v195
    %v552 = vunpack.c.h.b16 %v195
    %v553 = vunpack.c.l.b16 %v196
    %v554 = vunpack.c.h.b16 %v196
    %v555 = vunpack.c.l.b16 %v197
    %v556 = vunpack.c.h.b16 %v197
    %v557 = vunpack.c.l.b16 %v198
    %v558 = vunpack.c.h.b16 %v198
    %v559 = vunpack.c.l.b16 %v199
    %v560 = vunpack.c.h.b16 %v199
    %v561 = vunpack.c.l.b16 %v200
    %v562 = vunpack.c.h.b16 %v200
    %v563 = vunpack.c.l.b16 %v201
    %v564 = vunpack.c.h.b16 %v201
    %v565 = vunpack.c.l.b16 %v202
    %v566 = vunpack.c.h.b16 %v202
    %v567 = vunpack.c.l.b16 %v203
    %v568 = vunpack.c.h.b16 %v203
    %v569 = vunpack.c.l.b16 %v204
    %v570 = vunpack.c.h.b16 %v204
    %v571 = vunpack.c.l.b16 %v205
    %v572 = vunpack.c.h.b16 %v205
    %v573 = vunpack.c.l.b16 %v206
    %v574 = vunpack.c.h.b16 %v206
    %v575 = vunpack.c.l.b16 %v207
    %v576 = vunpack.c.h.b16 %v207
    %v577 = vunpack.c.l.b16 %v208
    %v578 = vunpack.c.h.b16 %v208
    %v579 = vunpack.c.l.b16 %v209
    %v580 = vunpack.c.h.b16 %v209
    %v581 = vunpack.c.l.b16 %v210
    %v582 = vunpack.c.h.b16 %v210
    %v583 = vunpack.c.l.b16 %v211
    %v584 = vunpack.c.h.b16 %v211
    %v585 = vunpack.c.l.b16 %v212
    %v586 = vunpack.c.h.b16 %v212
    %v587 = vunpack.c.l.b16 %v213
    %v588 = vunpack.c.h.b16 %v213
    %v589 = vunpack.c.l.b16 %v214
    %v590 = vunpack.c.h.b16 %v214
    %v591 = vunpack.c.l.b16 %v215
    %v592 = vunpack.c.h.b16 %v215
    %v593 = vunpack.c.l.b16 %v216
    %v594 = vunpack.c.h.b16 %v216
    %v595 = vunpack.c.l.b16 %v217
    %v596 = vunpack.c.h.b16 %v217
    %v597 = vunpack.c.l.b16 %v218
    %v598 = vunpack.c.h.b16 %v218
    %v599 = vunpack.c.l.b16 %v219
    %v600 = vunpack.c.h.b16 %v219
    %v601 = vunpack.c.l.b16 %v220
    %v602 = vunpack.c.h.b16 %v220
    %v603 = vunpack.c.l.b16 %v221
    %v604 = vunpack.c.h.b16 %v221
    %v605 = vunpack.c.l.b16 %v222
    %v606 = vunpack.c.h.b16 %v222
    %v607 = vpack.c.b16 %v355, %v351
    %v608 = vpack.c.b16 %v356, %v352
    %v609 = vpack.c.b16 %v357, %v353
    %v610 = vpack.c.b16 %v358, %v354
    %v611 = vpack.c.b16 %v363, %v359
    %v612 = vpack.c.b16 %v364, %v360
    %v613 = vpack.c.b16 %v365, %v361
    %v614 = vpack.c.b16 %v366, %v362
    %v615 = vpack.c.b16 %v371, %v367
    %v616 = vpack.c.b16 %v372, %v368
    %v617 = vpack.c.b16 %v373, %v369
    %v618 = vpack.c.b16 %v374, %v370
    %v619 = vpack.c.b16 %v379, %v375
    %v620 = vpack.c.b16 %v380, %v376
    %v621 = vpack.c.b16 %v381, %v377
    %v622 = vpack.c.b16 %v382, %v378
    %v623 = vpack.c.b16 %v387, %v383
    %v624 = vpack.c.b16 %v388, %v384
    %v625 = vpack.c.b16 %v389, %v385
    %v626 = vpack.c.b16 %v390, %v386
    %v627 = vpack.c.b16 %v395, %v391
    %v628 = vpack.c.b16 %v396, %v392
    %v629 = vpack.c.b16 %v397, %v393
    %v630 = vpack.c.b16 %v398, %v394
    %v631 = vpack.c.b16 %v403, %v399
    %v632 = vpack.c.b16 %v404, %v400
    %v633 = vpack.c.b16 %v405, %v401
    %v634 = vpack.c.b16 %v406, %v402
    %v635 = vpack.c.b16 %v411, %v407
    %v636 = vpack.c.b16 %v412, %v408
    %v637 = vpack.c.b16 %v413, %v409
    %v638 = vpack.c.b16 %v414, %v410
    %v639 = vpack.c.b16 %v419, %v415
    %v640 = vpack.c.b16 %v420, %v416
    %v641 = vpack.c.b16 %v421, %v417
    %v642 = vpack.c.b16 %v422, %v418
    %v643 = vpack.c.b16 %v427, %v423
    %v644 = vpack.c.b16 %v428, %v424
    %v645 = vpack.c.b16 %v429, %v425
    %v646 = vpack.c.b16 %v430, %v426
    %v647 = vpack.c.b16 %v435, %v431
    %v648 = vpack.c.b16 %v436, %v432
    %v649 = vpack.c.b16 %v437, %v433
    %v650 = vpack.c.b16 %v438, %v434
    %v651 = vpack.c.b16 %v443, %v439
    %v652 = vpack.c.b16 %v444, %v440
    %v653 = vpack.c.b16 %v445, %v441
    %v654 = vpack.c.b16 %v446, %v442
    %v655 = vpack.c.b16 %v451, %v447
    %v656 = vpack.c.b16 %v452, %v448
    %v657 = vpack.c.b16 %v453, %v449
    %v658 = vpack.c.b16 %v454, %v450
    %v659 = vpack.c.b16 %v459, %v455
    %v660 = vpack.c.b16 %v460, %v456
    %v661 = vpack.c.b16 %v461, %v457
    %v662 = vpack.c.b16 %v462, %v458
    %v663 = vpack.c.b16 %v467, %v463
    %v664 = vpack.c.b16 %v468, %v464
    %v665 = vpack.c.b16 %v469, %v465
    %v666 = vpack.c.b16 %v470, %v466
    %v667 = vpack.c.b16 %v475, %v471
    %v668 = vpack.c.b16 %v476, %v472
    %v669 = vpack.c.b16 %v477, %v473
    %v670 = vpack.c.b16 %v478, %v474
    %v671 = vpack.c.b16 %v483, %v479
    %v672 = vpack.c.b16 %v484, %v480
    %v673 = vpack.c.b16 %v485, %v481
    %v674 = vpack.c.b16 %v486, %v482
    %v675 = vpack.c.b16 %v491, %v487
    %v676 = vpack.c.b16 %v492, %v488
    %v677 = vpack.c.b16 %v493, %v489
    %v678 = vpack.c.b16 %v494, %v490
    %v679 = vpack.c.b16 %v499, %v495
    %v680 = vpack.c.b16 %v500, %v496
    %v681 = vpack.c.b16 %v501, %v497
    %v682 = vpack.c.b16 %v502, %v498
    %v683 = vpack.c.b16 %v507, %v503
    %v684 = vpack.c.b16 %v508, %v504
    %v685 = vpack.c.b16 %v509, %v505
    %v686 = vpack.c.b16 %v510, %v506
    %v687 = vpack.c.b16 %v515, %v511
    %v688 = vpack.c.b16 %v516, %v512
    %v689 = vpack.c.b16 %v517, %v513
    %v690 = vpack.c.b16 %v518, %v514
    %v691 = vpack.c.b16 %v523, %v519
    %v692 = vpack.c.b16 %v524, %v520
    %v693 = vpack.c.b16 %v525, %v521
    %v694 = vpack.c.b16 %v526, %v522
    %v695 = vpack.c.b16 %v531, %v527
    %v696 = vpack.c.b16 %v532, %v528
    %v697 = vpack.c.b16 %v533, %v529
    %v698 = vpack.c.b16 %v534, %v530
    %v699 = vpack.c.b16 %v539, %v535
    %v700 = vpack.c.b16 %v540, %v536
    %v701 = vpack.c.b16 %v541, %v537
    %v702 = vpack.c.b16 %v542, %v538
    %v703 = vpack.c.b16 %v547, %v543
    %v704 = vpack.c.b16 %v548, %v544
    %v705 = vpack.c.b16 %v549, %v545
    %v706 = vpack.c.b16 %v550, %v546
    %v707 = vpack.c.b16 %v555, %v551
    %v708 = vpack.c.b16 %v556, %v552
    %v709 = vpack.c.b16 %v557, %v553
    %v710 = vpack.c.b16 %v558, %v554
    %v711 = vpack.c.b16 %v563, %v559
    %v712 = vpack.c.b16 %v564, %v560
    %v713 = vpack.c.b16 %v565, %v561
    %v714 = vpack.c.b16 %v566, %v562
    %v715 = vpack.c.b16 %v571, %v567
    %v716 = vpack.c.b16 %v572, %v568
    %v717 = vpack.c.b16 %v573, %v569
    %v718 = vpack.c.b16 %v574, %v570
    %v719 = vpack.c.b16 %v579, %v575
    %v720 = vpack.c.b16 %v580, %v576
    %v721 = vpack.c.b16 %v581, %v577
    %v722 = vpack.c.b16 %v582, %v578
    %v723 = vpack.c.b16 %v587, %v583
    %v724 = vpack.c.b16 %v588, %v584
    %v725 = vpack.c.b16 %v589, %v585
    %v726 = vpack.c.b16 %v590, %v586
    %v727 = vpack.c.b16 %v595, %v591
    %v728 = vpack.c.b16 %v596, %v592
    %v729 = vpack.c.b16 %v597, %v593
    %v730 = vpack.c.b16 %v598, %v594
    %v731 = vpack.c.b16 %v603, %v599
    %v732 = vpack.c.b16 %v604, %v600
    %v733 = vpack.c.b16 %v605, %v601
    %v734 = vpack.c.b16 %v606, %v602
    %863 = vmatpush.bf16.msra.mxu0 %v635
    %864 = vmatpush.bf16.msra.mxu0 %v631
    %865 = vmatpush.bf16.msra.mxu0 %v627
    %866 = vmatpush.bf16.msra.mxu0 %v623
    %867 = vmatpush.bf16.msra.mxu0 %v619
    %868 = vmatpush.bf16.msra.mxu0 %v615
    %869 = vmatpush.bf16.msra.mxu0 %v611
    %870 = vmatpush.bf16.msra.mxu0 %v607
    %871 = vmatmul.bf16.gmra.mxu0 %v91
    %v872 = vpop.f32.mrf.mxu0
    %v873 = vadd.f32 0.0, %v872
    %v874 = vpop.f32.mrf.mxu0
    %875 = vdwg.mxu0
    %876 = vmatpush.bf16.msra.mxu0 %v667
    %877 = vmatpush.bf16.msra.mxu0 %v663
    %878 = vmatpush.bf16.msra.mxu0 %v659
    %879 = vmatpush.bf16.msra.mxu0 %v655
    %880 = vmatpush.bf16.msra.mxu0 %v651
    %881 = vmatpush.bf16.msra.mxu0 %v647
    %882 = vmatpush.bf16.msra.mxu0 %v643
    %883 = vmatpush.bf16.msra.mxu0 %v639
    %884 = vmatmul.bf16.gmra.mxu0 %v92
    %v885 = vpop.f32.mrf.mxu0
    %v886 = vadd.f32 %v873, %v885
    %v887 = vpop.f32.mrf.mxu0
    %888 = vdwg.mxu0
    %889 = vmatpush.bf16.msra.mxu0 %v699
    %890 = vmatpush.bf16.msra.mxu0 %v695
    %891 = vmatpush.bf16.msra.mxu0 %v691
    %892 = vmatpush.bf16.msra.mxu0 %v687
    %893 = vmatpush.bf16.msra.mxu0 %v683
    %894 = vmatpush.bf16.msra.mxu0 %v679
    %895 = vmatpush.bf16.msra.mxu0 %v675
    %896 = vmatpush.bf16.msra.mxu0 %v671
    %897 = vmatmul.bf16.gmra.mxu0 %v93
    %v898 = vpop.f32.mrf.mxu0
    %v899 = vadd.f32 %v886, %v898
    %v900 = vpop.f32.mrf.mxu0
    %901 = vdwg.mxu0
    %902 = vmatpush.bf16.msra.mxu0 %v731
    %903 = vmatpush.bf16.msra.mxu0 %v727
    %904 = vmatpush.bf16.msra.mxu0 %v723
    %905 = vmatpush.bf16.msra.mxu0 %v719
    %906 = vmatpush.bf16.msra.mxu0 %v715
    %907 = vmatpush.bf16.msra.mxu0 %v711
    %908 = vmatpush.bf16.msra.mxu0 %v707
    %909 = vmatpush.bf16.msra.mxu0 %v703
    %910 = vmatmul.bf16.gmra.mxu0 %v94
    %v911 = vpop.f32.mrf.mxu0
    %v912 = vadd.f32 %v899, %v911
    %v913 = vpop.f32.mrf.mxu0
    %914 = vdwg.mxu0
    %915 = vmatpush.bf16.msra.mxu0 %v636
    %916 = vmatpush.bf16.msra.mxu0 %v632
    %917 = vmatpush.bf16.msra.mxu0 %v628
    %918 = vmatpush.bf16.msra.mxu0 %v624
    %919 = vmatpush.bf16.msra.mxu0 %v620
    %920 = vmatpush.bf16.msra.mxu0 %v616
    %921 = vmatpush.bf16.msra.mxu0 %v612
    %922 = vmatpush.bf16.msra.mxu0 %v608
    %923 = vmatmul.bf16.gmra.mxu0 %v91
    %v924 = vpop.f32.mrf.mxu0
    %v925 = vadd.f32 0.0, %v924
    %v926 = vpop.f32.mrf.mxu0
    %927 = vdwg.mxu0
    %928 = vmatpush.bf16.msra.mxu0 %v668
    %929 = vmatpush.bf16.msra.mxu0 %v664
    %930 = vmatpush.bf16.msra.mxu0 %v660
    %931 = vmatpush.bf16.msra.mxu0 %v656
    %932 = vmatpush.bf16.msra.mxu0 %v652
    %933 = vmatpush.bf16.msra.mxu0 %v648
    %934 = vmatpush.bf16.msra.mxu0 %v644
    %935 = vmatpush.bf16.msra.mxu0 %v640
    %936 = vmatmul.bf16.gmra.mxu0 %v92
    %v937 = vpop.f32.mrf.mxu0
    %v938 = vadd.f32 %v925, %v937
    %v939 = vpop.f32.mrf.mxu0
    %940 = vdwg.mxu0
    %941 = vmatpush.bf16.msra.mxu0 %v700
    %942 = vmatpush.bf16.msra.mxu0 %v696
    %943 = vmatpush.bf16.msra.mxu0 %v692
    %944 = vmatpush.bf16.msra.mxu0 %v688
    %945 = vmatpush.bf16.msra.mxu0 %v684
    %946 = vmatpush.bf16.msra.mxu0 %v680
    %947 = vmatpush.bf16.msra.mxu0 %v676
    %948 = vmatpush.bf16.msra.mxu0 %v672
    %949 = vmatmul.bf16.gmra.mxu0 %v93
    %v950 = vpop.f32.mrf.mxu0
    %v951 = vadd.f32 %v938, %v950
    %v952 = vpop.f32.mrf.mxu0
    %953 = vdwg.mxu0
    %954 = vmatpush.bf16.msra.mxu0 %v732
    %955 = vmatpush.bf16.msra.mxu0 %v728
    %956 = vmatpush.bf16.msra.mxu0 %v724
    %957 = vmatpush.bf16.msra.mxu0 %v720
    %958 = vmatpush.bf16.msra.mxu0 %v716
    %959 = vmatpush.bf16.msra.mxu0 %v712
    %960 = vmatpush.bf16.msra.mxu0 %v708
    %961 = vmatpush.bf16.msra.mxu0 %v704
    %962 = vmatmul.bf16.gmra.mxu0 %v94
    %v963 = vpop.f32.mrf.mxu0
    %v964 = vadd.f32 %v951, %v963
    %v965 = vpop.f32.mrf.mxu0
    %966 = vdwg.mxu0
    %967 = vmatpush.bf16.msra.mxu0 %v637
    %968 = vmatpush.bf16.msra.mxu0 %v633
    %969 = vmatpush.bf16.msra.mxu0 %v629
    %970 = vmatpush.bf16.msra.mxu0 %v625
    %971 = vmatpush.bf16.msra.mxu0 %v621
    %972 = vmatpush.bf16.msra.mxu0 %v617
    %973 = vmatpush.bf16.msra.mxu0 %v613
    %974 = vmatpush.bf16.msra.mxu0 %v609
    %975 = vmatmul.bf16.gmra.mxu0 %v91
    %v976 = vpop.f32.mrf.mxu0
    %v977 = vadd.f32 0.0, %v976
    %v978 = vpop.f32.mrf.mxu0
    %979 = vdwg.mxu0
    %980 = vmatpush.bf16.msra.mxu0 %v669
    %981 = vmatpush.bf16.msra.mxu0 %v665
    %982 = vmatpush.bf16.msra.mxu0 %v661
    %983 = vmatpush.bf16.msra.mxu0 %v657
    %984 = vmatpush.bf16.msra.mxu0 %v653
    %985 = vmatpush.bf16.msra.mxu0 %v649
    %986 = vmatpush.bf16.msra.mxu0 %v645
    %987 = vmatpush.bf16.msra.mxu0 %v641
    %988 = vmatmul.bf16.gmra.mxu0 %v92
    %v989 = vpop.f32.mrf.mxu0
    %v990 = vadd.f32 %v977, %v989
    %v991 = vpop.f32.mrf.mxu0
    %992 = vdwg.mxu0
    %993 = vmatpush.bf16.msra.mxu0 %v701
    %994 = vmatpush.bf16.msra.mxu0 %v697
    %995 = vmatpush.bf16.msra.mxu0 %v693
    %996 = vmatpush.bf16.msra.mxu0 %v689
    %997 = vmatpush.bf16.msra.mxu0 %v685
    %998 = vmatpush.bf16.msra.mxu0 %v681
    %999 = vmatpush.bf16.msra.mxu0 %v677
    %1000 = vmatpush.bf16.msra.mxu0 %v673
    %1001 = vmatmul.bf16.gmra.mxu0 %v93
    %v1002 = vpop.f32.mrf.mxu0
    %v1003 = vadd.f32 %v990, %v1002
    %v1004 = vpop.f32.mrf.mxu0
    %1005 = vdwg.mxu0
    %1006 = vmatpush.bf16.msra.mxu0 %v733
    %1007 = vmatpush.bf16.msra.mxu0 %v729
    %1008 = vmatpush.bf16.msra.mxu0 %v725
    %1009 = vmatpush.bf16.msra.mxu0 %v721
    %1010 = vmatpush.bf16.msra.mxu0 %v717
    %1011 = vmatpush.bf16.msra.mxu0 %v713
    %1012 = vmatpush.bf16.msra.mxu0 %v709
    %1013 = vmatpush.bf16.msra.mxu0 %v705
    %1014 = vmatmul.bf16.gmra.mxu0 %v94
    %v1015 = vpop.f32.mrf.mxu0
    %v1016 = vadd.f32 %v1003, %v1015
    %v1017 = vpop.f32.mrf.mxu0
    %1018 = vdwg.mxu0
    %1019 = vmatpush.bf16.msra.mxu0 %v638
    %1020 = vmatpush.bf16.msra.mxu0 %v634
    %1021 = vmatpush.bf16.msra.mxu0 %v630
    %1022 = vmatpush.bf16.msra.mxu0 %v626
    %1023 = vmatpush.bf16.msra.mxu0 %v622
    %1024 = vmatpush.bf16.msra.mxu0 %v618
    %1025 = vmatpush.bf16.msra.mxu0 %v614
    %1026 = vmatpush.bf16.msra.mxu0 %v610
    %1027 = vmatmul.bf16.gmra.mxu0 %v91
    %v1028 = vpop.f32.mrf.mxu0
    %v1029 = vadd.f32 0.0, %v1028
    %v1030 = vpop.f32.mrf.mxu0
    %1031 = vdwg.mxu0
    %1032 = vmatpush.bf16.msra.mxu0 %v670
    %1033 = vmatpush.bf16.msra.mxu0 %v666
    %1034 = vmatpush.bf16.msra.mxu0 %v662
    %1035 = vmatpush.bf16.msra.mxu0 %v658
    %1036 = vmatpush.bf16.msra.mxu0 %v654
    %1037 = vmatpush.bf16.msra.mxu0 %v650
    %1038 = vmatpush.bf16.msra.mxu0 %v646
    %1039 = vmatpush.bf16.msra.mxu0 %v642
    %1040 = vmatmul.bf16.gmra.mxu0 %v92
    %v1041 = vpop.f32.mrf.mxu0
    %v1042 = vadd.f32 %v1029, %v1041
    %v1043 = vpop.f32.mrf.mxu0
    %1044 = vdwg.mxu0
    %1045 = vmatpush.bf16.msra.mxu0 %v702
    %1046 = vmatpush.bf16.msra.mxu0 %v698
    %1047 = vmatpush.bf16.msra.mxu0 %v694
    %1048 = vmatpush.bf16.msra.mxu0 %v690
    %1049 = vmatpush.bf16.msra.mxu0 %v686
    %1050 = vmatpush.bf16.msra.mxu0 %v682
    %1051 = vmatpush.bf16.msra.mxu0 %v678
    %1052 = vmatpush.bf16.msra.mxu0 %v674
    %1053 = vmatmul.bf16.gmra.mxu0 %v93
    %v1054 = vpop.f32.mrf.mxu0
    %v1055 = vadd.f32 %v1042, %v1054
    %v1056 = vpop.f32.mrf.mxu0
    %1057 = vdwg.mxu0
    %1058 = vmatpush.bf16.msra.mxu0 %v734
    %1059 = vmatpush.bf16.msra.mxu0 %v730
    %1060 = vmatpush.bf16.msra.mxu0 %v726
    %1061 = vmatpush.bf16.msra.mxu0 %v722
    %1062 = vmatpush.bf16.msra.mxu0 %v718
    %1063 = vmatpush.bf16.msra.mxu0 %v714
    %1064 = vmatpush.bf16.msra.mxu0 %v710
    %1065 = vmatpush.bf16.msra.mxu0 %v706
    %1066 = vmatmul.bf16.gmra.mxu0 %v94
    %v1067 = vpop.f32.mrf.mxu0
    %v1068 = vadd.f32 %v1055, %v1067
    %v1069 = vpop.f32.mrf.mxu0
    %1070 = vdwg.mxu0
    %1071 = vst [vmem:[%s4] sm:$0xff] %v912
    %1072 = vst [vmem:[%s4 + $0x8] sm:$0xff] %v964
    %1073 = vst [vmem:[%s4 + $0x10] sm:$0xff] %v1016
    %1074 = vst [vmem:[%s4 + $0x18] sm:$0xff] %v1068
    %v1075 = vlaneseq
    %v1076 = vshrl.u32 %v1075, 7
    %s1077 = smul.u32 0, 8
    %v1078 = vstv %s1077
    %v1079 = vadd.s32 %v1076, %v1078
    %vm1080 = vcmp.lt.s32.totalorder %v1079, 8
    %v1081 = vsel %vm1080, %v912, 0.0
    %v1082 = vsel %vm1080, %v964, 0.0
    %v1083 = vsel %vm1080, %v1016, 0.0
    %v1084 = vsel %vm1080, %v1068, 0.0
    %v1085 = vrot.slane %v1081, 4
    %v1086 = vadd.f32 %v1081, %v1085
    %v1087 = vrot.slane %v1086, 2
    %v1088 = vadd.f32 %v1086, %v1087
    %v1089 = vrot.slane %v1088, 1
    %v1090 = vadd.f32 %v1088, %v1089
    %v1091 = vrot.slane %v1082, 4
    %v1092 = vadd.f32 %v1082, %v1091
    %v1093 = vrot.slane %v1092, 2
    %v1094 = vadd.f32 %v1092, %v1093
    %v1095 = vrot.slane %v1094, 1
    %v1096 = vadd.f32 %v1094, %v1095
    %v1097 = vrot.slane %v1083, 4
    %v1098 = vadd.f32 %v1083, %v1097
    %v1099 = vrot.slane %v1098, 2
    %v1100 = vadd.f32 %v1098, %v1099
    %v1101 = vrot.slane %v1100, 1
    %v1102 = vadd.f32 %v1100, %v1101
    %v1103 = vrot.slane %v1084, 4
    %v1104 = vadd.f32 %v1084, %v1103
    %v1105 = vrot.slane %v1104, 2
    %v1106 = vadd.f32 %v1104, %v1105
    %v1107 = vrot.slane %v1106, 1
    %v1108 = vadd.f32 %v1106, %v1107
    %v1109 = vmul.f32 %v1081, %v1081
    %v1110 = vmul.f32 %v1082, %v1082
    %v1111 = vmul.f32 %v1083, %v1083
    %v1112 = vmul.f32 %v1084, %v1084
    %v1113 = vrot.slane %v1109, 4
    %v1114 = vadd.f32 %v1109, %v1113
    %v1115 = vrot.slane %v1114, 2
    %v1116 = vadd.f32 %v1114, %v1115
    %v1117 = vrot.slane %v1116, 1
    %v1118 = vadd.f32 %v1116, %v1117
    %v1119 = vrot.slane %v1110, 4
    %v1120 = vadd.f32 %v1110, %v1119
    %v1121 = vrot.slane %v1120, 2
    %v1122 = vadd.f32 %v1120, %v1121
    %v1123 = vrot.slane %v1122, 1
    %v1124 = vadd.f32 %v1122, %v1123
    %v1125 = vrot.slane %v1111, 4
    %v1126 = vadd.f32 %v1111, %v1125
    %v1127 = vrot.slane %v1126, 2
    %v1128 = vadd.f32 %v1126, %v1127
    %v1129 = vrot.slane %v1128, 1
    %v1130 = vadd.f32 %v1128, %v1129
    %v1131 = vrot.slane %v1112, 4
    %v1132 = vadd.f32 %v1112, %v1131
    %v1133 = vrot.slane %v1132, 2
    %v1134 = vadd.f32 %v1132, %v1133
    %v1135 = vrot.slane %v1134, 1
    %v1136 = vadd.f32 %v1134, %v1135
    %vm1137 = vcmask 1040384
    %v1138 = vsel %vm1137, %v1090, %v1118
    %v1139 = vsel %vm1137, %v1096, %v1124
    %v1140 = vsel %vm1137, %v1102, %v1130
    %v1141 = vsel %vm1137, %v1108, %v1136
    %v1146 = vrot.slane %v1139, 6
    %v1147 = vrot.slane %v1140, 4
    %v1148 = vrot.slane %v1141, 2
    %vm1149 = vcmask 1041408
    %v1150 = vsel %vm1149, %v1138, %v1146
    %vm1151 = vcmask 1045508
    %v1152 = vsel %vm1151, %v1147, %v1148
    %vm1153 = vcmask 1043456
    %v1154 = vsel %vm1153, %v1150, %v1152
    %1156 = vst [vmem:[%s5] sm:$0xff] %v1154
    // Predicated region
    $region22: #{encoder_forward.4} parent=1 // pred_check
      _
    $region23: #{encoder_forward.4} parent=1 // pred_check_branch
      %1158 = sbr.rel (0) target = $region25
    $region24: #{encoder_forward.4} parent=1 // pred_region
      _
    $region25: #{encoder_forward.4} parent=1 // pred_fallthru
      _
    // Predicated region
    $region26: #{encoder_forward.4} parent=1 // pred_check
      _
    $region27: #{encoder_forward.4} parent=1 // pred_check_branch
      %1160 = sbr.rel (0) target = $region29
    $region28: #{encoder_forward.4} parent=1 // pred_region
      _
    $region29: #{encoder_forward.4} parent=1 // pred_fallthru
      _
    // Predicated region
    $region30: #{encoder_forward.4} parent=1 // pred_check
      _
    $region31: #{encoder_forward.4} parent=1 // pred_check_branch
      %1162 = sbr.rel (0) target = $region33
    $region32: #{encoder_forward.4} parent=1 // pred_region
      _
    $region33: #{encoder_forward.4} parent=1 // pred_fallthru
      _
    // Predicated region
    $region34: #{encoder_forward.4} parent=1 // pred_check
      _
    $region35: #{encoder_forward.4} parent=1 // pred_check_branch
      %1164 = sbr.rel (0) target = $region37
    $region36: #{encoder_forward.4} parent=1 // pred_region
      _
    $region37: #{encoder_forward.4} parent=1 // pred_fallthru
      _
    %1165 = vsyncpa [#allocation3], 1

</llo_original>
